<compile_context>
chip_gen: v7x
topology: tpu7x:2x2x1
jax: 0.10.0
libtpu: 0.0.40
codegen_flags: <defaults>
</compile_context>

<pallas_src>
import jax
import jax.numpy as jnp
from jax.experimental import pallas as pl
from jax.experimental.pallas import tpu as pltpu

# ---- hyperparameters (match GRUb.__init__ defaults; nf/ml chosen small) ----
NF = 4                        # conv in-channels (node feature dim)
ML = 33                       # sequence length (nodes per graph)
CO = 50                       # conv out-channels
KS = 17                       # conv kernel size
ST = 4                        # conv stride
GO = 16                       # GRU hidden size per direction
HN = 100                      # lin1 out
HN2 = 83                      # lin2 out
ZDIM = 12                     # lin1 in (data.z reshaped to (B, 12))
T_OUT = (ML - KS) // ST + 1   # conv output length (= 5)
LIN_IN = GO * 2 * T_OUT       # flattened GRU output size (= 160)
B = 2                         # batch size (graphs)


# ---------------------------------------------------------------------------
# Pallas kernel
# ---------------------------------------------------------------------------
def grub_kernel(patches_ref, z_ref,
                l1w_ref, l1b_ref, l2w_ref, l2b_ref,
                cw_ref, cb_ref,
                w0a_ref, w0b_ref, bgi0_ref, whh0_ref, bgh0_ref,
                wp1_ref, wq1_ref, bgi1_ref, whh1_ref, bgh1_ref,
                lw1_ref, lwz_ref, lb_ref,
                o_ref,
                st0_ref, st0r_ref):
    f32 = jnp.float32
    TB = T_OUT * B

    # ---- z branch: relu(lin1) -> dropout(id) -> relu(lin2) -> fold into out
    h = jnp.maximum(jnp.dot(z_ref[...], l1w_ref[...],
                            preferred_element_type=f32) + l1b_ref[...], 0.0)
    zf = jnp.maximum(jnp.dot(h, l2w_ref[...],
                             preferred_element_type=f32) + l2b_ref[...], 0.0)
    acc = jnp.sum(zf * lwz_ref[...], axis=1, keepdims=True) + lb_ref[...]   # (B,1)

    # ---- Conv1d as a single im2col matmul (+ReLU).  The patch matrix holds
    #      the time-ordered rows followed by the block-reversed rows.
    conv_both = jnp.maximum(
        jnp.dot(patches_ref[...], cw_ref[...], preferred_element_type=f32)
        + cb_ref[...], 0.0)                                  # (2*T*B, CO)
    conv = conv_both[:TB]                                    # time order
    conv_rev = conv_both[TB:]                                # reverse time order

    # ---- GRU layer 0: batched input projection (fwd gate cols use time s,
    #      bwd gate cols use time T-1-s), then fused bidirectional recurrence.
    gi0 = (jnp.dot(conv, w0a_ref[...], preferred_element_type=f32)
           + jnp.dot(conv_rev, w0b_ref[...], preferred_element_type=f32)
           + bgi0_ref[...])                                  # (T*B, 6*GO)

    whh0 = whh0_ref[...]
    bgh0 = bgh0_ref[...]
    hh = jnp.zeros((B, 2 * GO), f32)                         # [h_fwd | h_bwd]
    for s in range(T_OUT):
        gi = gi0[s * B:(s + 1) * B]                          # (B, 6*GO)
        gh = jnp.dot(hh, whh0, preferred_element_type=f32) + bgh0
        rz = jax.nn.sigmoid(gi[:, :4 * GO] + gh[:, :4 * GO])
        r = rz[:, :2 * GO]
        zg = rz[:, 2 * GO:]
        n = jnp.tanh(gi[:, 4 * GO:] + r * gh[:, 4 * GO:])
        hh = (1.0 - zg) * n + zg * hh
        # step-ordered and block-reversed copies for the layer-1 projection
        st0_ref[pl.ds(s * B, B), :] = hh
        st0r_ref[pl.ds((T_OUT - 1 - s) * B, B), :] = hh

    # ---- GRU layer 1: batched input projection from the layer-0 state slab.
    #      The fwd/bwd half-selection and time reversal of the layer-0 output
    #      are folded into the host-packed weights wp1 / wq1.
    gi1 = (jnp.dot(st0_ref[...], wp1_ref[...], preferred_element_type=f32)
           + jnp.dot(st0r_ref[...], wq1_ref[...], preferred_element_type=f32)
           + bgi1_ref[...])                                  # (T*B, 6*GO)

    whh1 = whh1_ref[...]
    bgh1 = bgh1_ref[...]
    lw1 = lw1_ref[...]                                       # (T, 2*GO)
    hh = jnp.zeros((B, 2 * GO), f32)
    for s in range(T_OUT):
        gi = gi1[s * B:(s + 1) * B]
        gh = jnp.dot(hh, whh1, preferred_element_type=f32) + bgh1
        rz = jax.nn.sigmoid(gi[:, :4 * GO] + gh[:, :4 * GO])
        r = rz[:, :2 * GO]
        zg = rz[:, 2 * GO:]
        n = jnp.tanh(gi[:, 4 * GO:] + r * gh[:, 4 * GO:])
        hh = (1.0 - zg) * n + zg * hh
        # final Linear: lane-dense multiply + reduce (flatten folded into lw1)
        acc = acc + jnp.sum(hh * lw1[s:s + 1, :], axis=1, keepdims=True)

    o_ref[...] = acc                                         # (B, 1)


# ---------------------------------------------------------------------------
# Parameters (PyTorch layouts) and host-side weight packing
# ---------------------------------------------------------------------------
def init_params(key):
    """Deterministic PyTorch-style uniform(-1/sqrt(fan_in)) init, torch layouts."""
    ks = jax.random.split(key, 13)

    def u(k, shape, fan_in):
        bound = 1.0 / float(fan_in) ** 0.5
        return jax.random.uniform(k, shape, jnp.float32, -bound, bound)

    p = {}
    p["l1w"] = u(ks[0], (HN, ZDIM), ZDIM)             # lin1 (out, in)
    p["l1b"] = u(ks[1], (HN,), ZDIM)
    p["l2w"] = u(ks[2], (HN2, HN), HN)                # lin2
    p["l2b"] = u(ks[3], (HN2,), HN)
    p["convw"] = u(ks[4], (CO, NF, KS), NF * KS)      # Conv1d (out, in, k)
    p["convb"] = u(ks[5], (CO,), NF * KS)
    # GRU torch layouts; index order: 0=l0 fwd, 1=l0 bwd, 2=l1 fwd, 3=l1 bwd
    p["wih0"] = u(ks[6], (2, 3 * GO, CO), GO)
    p["wih1"] = u(ks[7], (2, 3 * GO, 2 * GO), GO)
    p["whh"] = u(ks[8], (4, 3 * GO, GO), GO)
    p["bih"] = u(ks[9], (4, 3 * GO), GO)
    p["bhh"] = u(ks[10], (4, 3 * GO), GO)
    p["lw"] = u(ks[11], (1, LIN_IN + HN2), LIN_IN + HN2)
    p["lb"] = u(ks[12], (1,), LIN_IN + HN2)
    return p


def pack_params(p):
    """Repack torch-layout params into the fused/interleaved kernel layouts.

    Gate-column layout of every 6*GO-wide packed matrix/bias:
        [r_fwd | r_bwd | z_fwd | z_bwd | n_fwd | n_bwd]   (each block GO wide)
    """
    f32 = jnp.float32

    def place_cols(w_t, is_bwd):
        # w_t: (in_dim, 3*GO) with columns [r | z | n]
        zblk = jnp.zeros_like(w_t[:, :GO])
        r, zg, n = w_t[:, :GO], w_t[:, GO:2 * GO], w_t[:, 2 * GO:]
        if is_bwd:
            return jnp.concatenate([zblk, r, zblk, zg, zblk, n], axis=1)
        return jnp.concatenate([r, zblk, zg, zblk, n, zblk], axis=1)

    def fold_gi_bias(bih_d, bhh_d):
        # fold b_hh into b_ih for r/z gates; keep b_ih_n alone for the n gate
        return jnp.concatenate([bih_d[:2 * GO] + bhh_d[:2 * GO], bih_d[2 * GO:]])

    def pack_gi_bias(bf, bb):
        return jnp.concatenate([bf[:GO], bb[:GO], bf[GO:2 * GO], bb[GO:2 * GO],
                                bf[2 * GO:], bb[2 * GO:]])[None, :]

    def pack_gh_bias(bhh_f, bhh_b):
        return jnp.concatenate([jnp.zeros((4 * GO,), f32),
                                bhh_f[2 * GO:], bhh_b[2 * GO:]])[None, :]

    out = {}
    # z-branch linears: (out, in) -> (in, out)
    out["l1w"] = p["l1w"].T
    out["l1b"] = p["l1b"][None, :]
    out["l2w"] = p["l2w"].T
    out["l2b"] = p["l2b"][None, :]
    # conv -> im2col weight (KS*NF, CO): row index = k*NF + c
    out["cw"] = jnp.transpose(p["convw"], (2, 1, 0)).reshape(KS * NF, CO)
    out["cb"] = p["convb"][None, :]
    # ---- GRU layer 0 (input = conv features)
    out["w0a"] = place_cols(p["wih0"][0].T, False)           # fwd cols
    out["w0b"] = place_cols(p["wih0"][1].T, True)            # bwd cols
    out["bgi0"] = pack_gi_bias(fold_gi_bias(p["bih"][0], p["bhh"][0]),
                               fold_gi_bias(p["bih"][1], p["bhh"][1]))
    out["whh0"] = jnp.concatenate([place_cols(p["whh"][0].T, False),
                                   place_cols(p["whh"][1].T, True)], axis=0)
    out["bgh0"] = pack_gh_bias(p["bhh"][0], p["bhh"][1])
    # ---- GRU layer 1 (input = [layer-0 fwd ; layer-0 bwd] at each time)
    w1a = place_cols(p["wih1"][0].T, False)                  # (2*GO, 6*GO)
    w1b = place_cols(p["wih1"][1].T, True)
    # gi1_step[s] = st0[s] @ wp1 + st0[T-1-s] @ wq1   (st0 = step-ordered states)
    out["wp1"] = jnp.concatenate([w1a[:GO], w1b[GO:]], axis=0)
    out["wq1"] = jnp.concatenate([w1b[:GO], w1a[GO:]], axis=0)
    out["bgi1"] = pack_gi_bias(fold_gi_bias(p["bih"][2], p["bhh"][2]),
                               fold_gi_bias(p["bih"][3], p["bhh"][3]))
    out["whh1"] = jnp.concatenate([place_cols(p["whh"][2].T, False),
                                   place_cols(p["whh"][3].T, True)], axis=0)
    out["bgh1"] = pack_gh_bias(p["bhh"][2], p["bhh"][3])
    # ---- final Linear: fold the (time, [fwd|bwd]) flatten and the backward
    #      time reversal into a (T, 2*GO) weight usable on step-ordered states
    lw = p["lw"][0]                                          # (LIN_IN + HN2,)
    g = lw[:LIN_IN].reshape(T_OUT, 2, GO)
    out["lw1"] = jnp.concatenate([g[:, 0, :], g[::-1, 1, :]], axis=1)
    out["lwz"] = lw[LIN_IN:][None, :]
    out["lb"] = p["lb"].reshape(1, 1)
    return out


# ---------------------------------------------------------------------------
# Wrapper
# ---------------------------------------------------------------------------
@jax.jit
def grub_forward(x, z, params):
    # x: (B, ML, NF) node features per graph (as in the PyTorch module); z: (B, 12)
    x = x.astype(jnp.float32)
    z = z.astype(jnp.float32)
    kp = pack_params(params)

    # im2col patch matrix: row (t, b) -> x[b, t*ST + k, c] at column k*NF + c.
    # The block-reversed (time-reversed) rows are appended so the kernel gets
    # both orders from one matmul.
    patch_list = [x[:, t * ST:t * ST + KS, :].reshape(B, KS * NF)
                  for t in range(T_OUT)]
    patches = jnp.concatenate(patch_list + patch_list[::-1], axis=0)  # (2*T*B, KS*NF)

    args = (patches, z,
            kp["l1w"], kp["l1b"], kp["l2w"], kp["l2b"],
            kp["cw"], kp["cb"],
            kp["w0a"], kp["w0b"], kp["bgi0"], kp["whh0"], kp["bgh0"],
            kp["wp1"], kp["wq1"], kp["bgi1"], kp["whh1"], kp["bgh1"],
            kp["lw1"], kp["lwz"], kp["lb"])

    vmem = pltpu.MemorySpace.VMEM
    return pl.pallas_call(
        grub_kernel,
        out_shape=jax.ShapeDtypeStruct((B, 1), jnp.float32),
        in_specs=[pl.BlockSpec(memory_space=vmem)] * len(args),
        out_specs=pl.BlockSpec(memory_space=vmem),
        scratch_shapes=[pltpu.VMEM((T_OUT * B, 2 * GO), jnp.float32),   # layer-0 states (step order)
                        pltpu.VMEM((T_OUT * B, 2 * GO), jnp.float32)],  # layer-0 states (reversed)
    )(*args)


# ---------------------------------------------------------------------------
# Pure-JAX reference with the original (torch-structured) math
# ---------------------------------------------------------------------------
def reference_forward(x, z, p):
    hp = jax.lax.Precision.HIGHEST
    dot = lambda a, b: jnp.dot(a, b, precision=hp)
    relu = lambda v: jnp.maximum(v, 0.0)
    x = x.astype(jnp.float32)
    z = z.astype(jnp.float32)

    zf = relu(dot(z, p["l1w"].T) + p["l1b"])
    zf = relu(dot(zf, p["l2w"].T) + p["l2b"])

    conv = []
    for t in range(T_OUT):
        patch = x[:, t * ST:t * ST + KS, :]                  # (B, KS, NF)
        v = jnp.einsum("bkc,ock->bo", patch, p["convw"], precision=hp) + p["convb"]
        conv.append(relu(v))

    def run_dir(inputs, wih, whh, bih, bhh, reverse):
        h = jnp.zeros((B, GO), jnp.float32)
        outs = [None] * T_OUT
        order = range(T_OUT - 1, -1, -1) if reverse else range(T_OUT)
        for t in order:
            gi = dot(inputs[t], wih.T) + bih
            gh = dot(h, whh.T) + bhh
            r = jax.nn.sigmoid(gi[:, :GO] + gh[:, :GO])
            zg = jax.nn.sigmoid(gi[:, GO:2 * GO] + gh[:, GO:2 * GO])
            n = jnp.tanh(gi[:, 2 * GO:] + r * gh[:, 2 * GO:])
            h = (1.0 - zg) * n + zg * h
            outs[t] = h
        return outs

    l0f = run_dir(conv, p["wih0"][0], p["whh"][0], p["bih"][0], p["bhh"][0], False)
    l0b = run_dir(conv, p["wih0"][1], p["whh"][1], p["bih"][1], p["bhh"][1], True)
    in1 = [jnp.concatenate([l0f[t], l0b[t]], axis=1) for t in range(T_OUT)]
    l1f = run_dir(in1, p["wih1"][0], p["whh"][2], p["bih"][2], p["bhh"][2], False)
    l1bk = run_dir(in1, p["wih1"][1], p["whh"][3], p["bih"][3], p["bhh"][3], True)

    gru_flat = jnp.concatenate(
        [jnp.concatenate([l1f[t], l1bk[t]], axis=1) for t in range(T_OUT)], axis=1)
    full = jnp.concatenate([gru_flat, zf], axis=1)           # (B, LIN_IN + HN2)
    return dot(full, p["lw"].T) + p["lb"]


if __name__ == "__main__":
    key = jax.random.PRNGKey(0)
    kx, kz, kparam = jax.random.split(key, 3)
    # data.x unbatched into (B, ML, NF) node features, data.z reshaped to (B, 12)
    x = jax.random.normal(kx, (B, ML, NF), jnp.float32)
    z = jax.random.normal(kz, (B, ZDIM), jnp.float32)
    params = init_params(kparam)

    out = grub_forward(x, z, params)
    jax.block_until_ready(out)
    assert out.shape == (B, 1) and out.dtype == jnp.float32

    ref = reference_forward(x, z, params)
    # Tightened from the previous 5e-2; remaining slack only covers MXU f32
    # pass / transcendental implementation differences between Mosaic and XLA.
    assert jnp.allclose(out, ref, atol=1e-3, rtol=1e-3)

    print("KERNEL_OK")
</pallas_src>

<mosaic_0001>
module attributes {stable_mosaic.version = 11 : i64} {
  func.func @grub_kernel(%arg0: memref<20x68xf32, #tpu.memory_space<vmem>>, %arg1: memref<2x12xf32, #tpu.memory_space<vmem>>, %arg2: memref<12x100xf32, #tpu.memory_space<vmem>>, %arg3: memref<1x100xf32, #tpu.memory_space<vmem>>, %arg4: memref<100x83xf32, #tpu.memory_space<vmem>>, %arg5: memref<1x83xf32, #tpu.memory_space<vmem>>, %arg6: memref<68x50xf32, #tpu.memory_space<vmem>>, %arg7: memref<1x50xf32, #tpu.memory_space<vmem>>, %arg8: memref<50x96xf32, #tpu.memory_space<vmem>>, %arg9: memref<50x96xf32, #tpu.memory_space<vmem>>, %arg10: memref<1x96xf32, #tpu.memory_space<vmem>>, %arg11: memref<32x96xf32, #tpu.memory_space<vmem>>, %arg12: memref<1x96xf32, #tpu.memory_space<vmem>>, %arg13: memref<32x96xf32, #tpu.memory_space<vmem>>, %arg14: memref<32x96xf32, #tpu.memory_space<vmem>>, %arg15: memref<1x96xf32, #tpu.memory_space<vmem>>, %arg16: memref<32x96xf32, #tpu.memory_space<vmem>>, %arg17: memref<1x96xf32, #tpu.memory_space<vmem>>, %arg18: memref<5x32xf32, #tpu.memory_space<vmem>>, %arg19: memref<1x83xf32, #tpu.memory_space<vmem>>, %arg20: memref<1x1xf32, #tpu.memory_space<vmem>>, %arg21: memref<2x1xf32, #tpu.memory_space<vmem>>, %arg22: memref<10x32xf32, #tpu.memory_space<vmem>>, %arg23: memref<10x32xf32, #tpu.memory_space<vmem>>) attributes {dimension_semantics = [], scalar_prefetch = 0 : i64, scratch_operands = 2 : i64, tpu.core_type = #tpu.core_type<tc>} {
    %c0 = arith.constant 0 : index
    %c0_0 = arith.constant 0 : index
    %0 = vector.load %arg1[%c0, %c0_0] : memref<2x12xf32, #tpu.memory_space<vmem>>, vector<2x12xf32>
    %c0_1 = arith.constant 0 : index
    %c0_2 = arith.constant 0 : index
    %1 = vector.load %arg2[%c0_1, %c0_2] : memref<12x100xf32, #tpu.memory_space<vmem>>, vector<12x100xf32>
    %cst = arith.constant dense<0.000000e+00> : vector<2x100xf32>
    %2 = tpu.matmul %0, %1, %cst {dimension_numbers = #tpu.dot_dimension_numbers<[1], [0], [0], [1], [0, 0, 1, 1], [], []>} : vector<2x12xf32>, vector<12x100xf32>, vector<2x100xf32> -> vector<2x100xf32>
    %c0_3 = arith.constant 0 : index
    %c0_4 = arith.constant 0 : index
    %3 = vector.load %arg3[%c0_3, %c0_4] : memref<1x100xf32, #tpu.memory_space<vmem>>, vector<1x100xf32>
    %4 = vector.broadcast %3 : vector<1x100xf32> to vector<2x100xf32>
    %5 = arith.addf %2, %4 : vector<2x100xf32>
    %cst_5 = arith.constant 0.000000e+00 : f32
    %6 = vector.broadcast %cst_5 : f32 to vector<2x100xf32>
    %7 = arith.maximumf %5, %6 : vector<2x100xf32>
    %c0_6 = arith.constant 0 : index
    %c0_7 = arith.constant 0 : index
    %8 = vector.load %arg4[%c0_6, %c0_7] : memref<100x83xf32, #tpu.memory_space<vmem>>, vector<100x83xf32>
    %cst_8 = arith.constant dense<0.000000e+00> : vector<2x83xf32>
    %9 = tpu.matmul %7, %8, %cst_8 {dimension_numbers = #tpu.dot_dimension_numbers<[1], [0], [0], [1], [0, 0, 1, 1], [], []>} : vector<2x100xf32>, vector<100x83xf32>, vector<2x83xf32> -> vector<2x83xf32>
    %c0_9 = arith.constant 0 : index
    %c0_10 = arith.constant 0 : index
    %10 = vector.load %arg5[%c0_9, %c0_10] : memref<1x83xf32, #tpu.memory_space<vmem>>, vector<1x83xf32>
    %11 = vector.broadcast %10 : vector<1x83xf32> to vector<2x83xf32>
    %12 = arith.addf %9, %11 : vector<2x83xf32>
    %cst_11 = arith.constant 0.000000e+00 : f32
    %13 = vector.broadcast %cst_11 : f32 to vector<2x83xf32>
    %14 = arith.maximumf %12, %13 : vector<2x83xf32>
    %c0_12 = arith.constant 0 : index
    %c0_13 = arith.constant 0 : index
    %15 = vector.load %arg19[%c0_12, %c0_13] : memref<1x83xf32, #tpu.memory_space<vmem>>, vector<1x83xf32>
    %16 = vector.broadcast %15 : vector<1x83xf32> to vector<2x83xf32>
    %17 = arith.mulf %14, %16 : vector<2x83xf32>
    %cst_14 = arith.constant dense<0.000000e+00> : vector<2xf32>
    %18 = vector.multi_reduction <add>, %17, %cst_14 [1] : vector<2x83xf32> to vector<2xf32>
    %19 = vector.shape_cast %18 : vector<2xf32> to vector<2x1xf32>
    %c0_15 = arith.constant 0 : index
    %c0_16 = arith.constant 0 : index
    %20 = vector.load %arg20[%c0_15, %c0_16] : memref<1x1xf32, #tpu.memory_space<vmem>>, vector<1x1xf32>
    %21 = vector.broadcast %20 : vector<1x1xf32> to vector<2x1xf32>
    %22 = arith.addf %19, %21 : vector<2x1xf32>
    %c0_17 = arith.constant 0 : index
    %c0_18 = arith.constant 0 : index
    %23 = vector.load %arg0[%c0_17, %c0_18] : memref<20x68xf32, #tpu.memory_space<vmem>>, vector<20x68xf32>
    %c0_19 = arith.constant 0 : index
    %c0_20 = arith.constant 0 : index
    %24 = vector.load %arg6[%c0_19, %c0_20] : memref<68x50xf32, #tpu.memory_space<vmem>>, vector<68x50xf32>
    %cst_21 = arith.constant dense<0.000000e+00> : vector<20x50xf32>
    %25 = tpu.matmul %23, %24, %cst_21 {dimension_numbers = #tpu.dot_dimension_numbers<[1], [0], [0], [1], [0, 0, 1, 1], [], []>} : vector<20x68xf32>, vector<68x50xf32>, vector<20x50xf32> -> vector<20x50xf32>
    %c0_22 = arith.constant 0 : index
    %c0_23 = arith.constant 0 : index
    %26 = vector.load %arg7[%c0_22, %c0_23] : memref<1x50xf32, #tpu.memory_space<vmem>>, vector<1x50xf32>
    %27 = vector.broadcast %26 : vector<1x50xf32> to vector<20x50xf32>
    %28 = arith.addf %25, %27 : vector<20x50xf32>
    %cst_24 = arith.constant 0.000000e+00 : f32
    %29 = vector.broadcast %cst_24 : f32 to vector<20x50xf32>
    %30 = arith.maximumf %28, %29 : vector<20x50xf32>
    %31 = vector.extract_strided_slice %30 {offsets = [0, 0], sizes = [10, 50], strides = [1, 1]} : vector<20x50xf32> to vector<10x50xf32>
    %32 = vector.extract_strided_slice %30 {offsets = [10, 0], sizes = [10, 50], strides = [1, 1]} : vector<20x50xf32> to vector<10x50xf32>
    %c0_25 = arith.constant 0 : index
    %c0_26 = arith.constant 0 : index
    %33 = vector.load %arg8[%c0_25, %c0_26] : memref<50x96xf32, #tpu.memory_space<vmem>>, vector<50x96xf32>
    %cst_27 = arith.constant dense<0.000000e+00> : vector<10x96xf32>
    %34 = tpu.matmul %31, %33, %cst_27 {dimension_numbers = #tpu.dot_dimension_numbers<[1], [0], [0], [1], [0, 0, 1, 1], [], []>} : vector<10x50xf32>, vector<50x96xf32>, vector<10x96xf32> -> vector<10x96xf32>
    %c0_28 = arith.constant 0 : index
    %c0_29 = arith.constant 0 : index
    %35 = vector.load %arg9[%c0_28, %c0_29] : memref<50x96xf32, #tpu.memory_space<vmem>>, vector<50x96xf32>
    %cst_30 = arith.constant dense<0.000000e+00> : vector<10x96xf32>
    %36 = tpu.matmul %32, %35, %cst_30 {dimension_numbers = #tpu.dot_dimension_numbers<[1], [0], [0], [1], [0, 0, 1, 1], [], []>} : vector<10x50xf32>, vector<50x96xf32>, vector<10x96xf32> -> vector<10x96xf32>
    %37 = arith.addf %34, %36 : vector<10x96xf32>
    %c0_31 = arith.constant 0 : index
    %c0_32 = arith.constant 0 : index
    %38 = vector.load %arg10[%c0_31, %c0_32] : memref<1x96xf32, #tpu.memory_space<vmem>>, vector<1x96xf32>
    %39 = vector.broadcast %38 : vector<1x96xf32> to vector<10x96xf32>
    %40 = arith.addf %37, %39 : vector<10x96xf32>
    %c0_33 = arith.constant 0 : index
    %c0_34 = arith.constant 0 : index
    %41 = vector.load %arg11[%c0_33, %c0_34] : memref<32x96xf32, #tpu.memory_space<vmem>>, vector<32x96xf32>
    %c0_35 = arith.constant 0 : index
    %c0_36 = arith.constant 0 : index
    %42 = vector.load %arg12[%c0_35, %c0_36] : memref<1x96xf32, #tpu.memory_space<vmem>>, vector<1x96xf32>
    %cst_37 = arith.constant 0.000000e+00 : f32
    %43 = vector.broadcast %cst_37 : f32 to vector<2x32xf32>
    %44 = vector.extract_strided_slice %40 {offsets = [0, 0], sizes = [2, 96], strides = [1, 1]} : vector<10x96xf32> to vector<2x96xf32>
    %cst_38 = arith.constant dense<0.000000e+00> : vector<2x96xf32>
    %45 = tpu.matmul %43, %41, %cst_38 {dimension_numbers = #tpu.dot_dimension_numbers<[1], [0], [0], [1], [0, 0, 1, 1], [], []>} : vector<2x32xf32>, vector<32x96xf32>, vector<2x96xf32> -> vector<2x96xf32>
    %46 = vector.broadcast %42 : vector<1x96xf32> to vector<2x96xf32>
    %47 = arith.addf %45, %46 : vector<2x96xf32>
    %48 = vector.extract_strided_slice %44 {offsets = [0, 0], sizes = [2, 64], strides = [1, 1]} : vector<2x96xf32> to vector<2x64xf32>
    %49 = vector.extract_strided_slice %47 {offsets = [0, 0], sizes = [2, 64], strides = [1, 1]} : vector<2x96xf32> to vector<2x64xf32>
    %50 = arith.addf %48, %49 : vector<2x64xf32>
    %51 = arith.negf %50 : vector<2x64xf32>
    %52 = math.exp %51 : vector<2x64xf32>
    %cst_39 = arith.constant 1.000000e+00 : f32
    %53 = vector.broadcast %cst_39 : f32 to vector<2x64xf32>
    %54 = arith.addf %53, %52 : vector<2x64xf32>
    %55 = arith.divf %53, %54 : vector<2x64xf32>
    %56 = vector.extract_strided_slice %55 {offsets = [0, 0], sizes = [2, 32], strides = [1, 1]} : vector<2x64xf32> to vector<2x32xf32>
    %57 = vector.extract_strided_slice %55 {offsets = [0, 32], sizes = [2, 32], strides = [1, 1]} : vector<2x64xf32> to vector<2x32xf32>
    %58 = vector.extract_strided_slice %44 {offsets = [0, 64], sizes = [2, 32], strides = [1, 1]} : vector<2x96xf32> to vector<2x32xf32>
    %59 = vector.extract_strided_slice %47 {offsets = [0, 64], sizes = [2, 32], strides = [1, 1]} : vector<2x96xf32> to vector<2x32xf32>
    %60 = arith.mulf %56, %59 : vector<2x32xf32>
    %61 = arith.addf %58, %60 : vector<2x32xf32>
    %62 = math.tanh %61 : vector<2x32xf32>
    %cst_40 = arith.constant 1.000000e+00 : f32
    %63 = vector.broadcast %cst_40 : f32 to vector<2x32xf32>
    %64 = arith.subf %63, %57 : vector<2x32xf32>
    %65 = arith.mulf %64, %62 : vector<2x32xf32>
    %66 = arith.mulf %57, %43 : vector<2x32xf32>
    %67 = arith.addf %65, %66 : vector<2x32xf32>
    %c0_41 = arith.constant 0 : index
    %c0_42 = arith.constant 0 : index
    %68 = vector.load %arg22[%c0_41, %c0_42] : memref<10x32xf32, #tpu.memory_space<vmem>>, vector<2x32xf32>
    tpu.vector_store %arg22[%c0_41, %c0_42], %67 {strides = array<i32>} : memref<10x32xf32, #tpu.memory_space<vmem>>, vector<2x32xf32>,
    %c8 = arith.constant 8 : index
    %c0_43 = arith.constant 0 : index
    %69 = vector.load %arg23[%c8, %c0_43] : memref<10x32xf32, #tpu.memory_space<vmem>>, vector<2x32xf32>
    tpu.vector_store %arg23[%c8, %c0_43], %67 {strides = array<i32>} : memref<10x32xf32, #tpu.memory_space<vmem>>, vector<2x32xf32>,
    %70 = vector.extract_strided_slice %40 {offsets = [2, 0], sizes = [2, 96], strides = [1, 1]} : vector<10x96xf32> to vector<2x96xf32>
    %cst_44 = arith.constant dense<0.000000e+00> : vector<2x96xf32>
    %71 = tpu.matmul %67, %41, %cst_44 {dimension_numbers = #tpu.dot_dimension_numbers<[1], [0], [0], [1], [0, 0, 1, 1], [], []>} : vector<2x32xf32>, vector<32x96xf32>, vector<2x96xf32> -> vector<2x96xf32>
    %72 = vector.broadcast %42 : vector<1x96xf32> to vector<2x96xf32>
    %73 = arith.addf %71, %72 : vector<2x96xf32>
    %74 = vector.extract_strided_slice %70 {offsets = [0, 0], sizes = [2, 64], strides = [1, 1]} : vector<2x96xf32> to vector<2x64xf32>
    %75 = vector.extract_strided_slice %73 {offsets = [0, 0], sizes = [2, 64], strides = [1, 1]} : vector<2x96xf32> to vector<2x64xf32>
    %76 = arith.addf %74, %75 : vector<2x64xf32>
    %77 = arith.negf %76 : vector<2x64xf32>
    %78 = math.exp %77 : vector<2x64xf32>
    %cst_45 = arith.constant 1.000000e+00 : f32
    %79 = vector.broadcast %cst_45 : f32 to vector<2x64xf32>
    %80 = arith.addf %79, %78 : vector<2x64xf32>
    %81 = arith.divf %79, %80 : vector<2x64xf32>
    %82 = vector.extract_strided_slice %81 {offsets = [0, 0], sizes = [2, 32], strides = [1, 1]} : vector<2x64xf32> to vector<2x32xf32>
    %83 = vector.extract_strided_slice %81 {offsets = [0, 32], sizes = [2, 32], strides = [1, 1]} : vector<2x64xf32> to vector<2x32xf32>
    %84 = vector.extract_strided_slice %70 {offsets = [0, 64], sizes = [2, 32], strides = [1, 1]} : vector<2x96xf32> to vector<2x32xf32>
    %85 = vector.extract_strided_slice %73 {offsets = [0, 64], sizes = [2, 32], strides = [1, 1]} : vector<2x96xf32> to vector<2x32xf32>
    %86 = arith.mulf %82, %85 : vector<2x32xf32>
    %87 = arith.addf %84, %86 : vector<2x32xf32>
    %88 = math.tanh %87 : vector<2x32xf32>
    %cst_46 = arith.constant 1.000000e+00 : f32
    %89 = vector.broadcast %cst_46 : f32 to vector<2x32xf32>
    %90 = arith.subf %89, %83 : vector<2x32xf32>
    %91 = arith.mulf %90, %88 : vector<2x32xf32>
    %92 = arith.mulf %83, %67 : vector<2x32xf32>
    %93 = arith.addf %91, %92 : vector<2x32xf32>
    %c2 = arith.constant 2 : index
    %c0_47 = arith.constant 0 : index
    %94 = vector.load %arg22[%c2, %c0_47] : memref<10x32xf32, #tpu.memory_space<vmem>>, vector<2x32xf32>
    tpu.vector_store %arg22[%c2, %c0_47], %93 {strides = array<i32>} : memref<10x32xf32, #tpu.memory_space<vmem>>, vector<2x32xf32>,
    %c6 = arith.constant 6 : index
    %c0_48 = arith.constant 0 : index
    %95 = vector.load %arg23[%c6, %c0_48] : memref<10x32xf32, #tpu.memory_space<vmem>>, vector<2x32xf32>
    tpu.vector_store %arg23[%c6, %c0_48], %93 {strides = array<i32>} : memref<10x32xf32, #tpu.memory_space<vmem>>, vector<2x32xf32>,
    %96 = vector.extract_strided_slice %40 {offsets = [4, 0], sizes = [2, 96], strides = [1, 1]} : vector<10x96xf32> to vector<2x96xf32>
    %cst_49 = arith.constant dense<0.000000e+00> : vector<2x96xf32>
    %97 = tpu.matmul %93, %41, %cst_49 {dimension_numbers = #tpu.dot_dimension_numbers<[1], [0], [0], [1], [0, 0, 1, 1], [], []>} : vector<2x32xf32>, vector<32x96xf32>, vector<2x96xf32> -> vector<2x96xf32>
    %98 = vector.broadcast %42 : vector<1x96xf32> to vector<2x96xf32>
    %99 = arith.addf %97, %98 : vector<2x96xf32>
    %100 = vector.extract_strided_slice %96 {offsets = [0, 0], sizes = [2, 64], strides = [1, 1]} : vector<2x96xf32> to vector<2x64xf32>
    %101 = vector.extract_strided_slice %99 {offsets = [0, 0], sizes = [2, 64], strides = [1, 1]} : vector<2x96xf32> to vector<2x64xf32>
    %102 = arith.addf %100, %101 : vector<2x64xf32>
    %103 = arith.negf %102 : vector<2x64xf32>
    %104 = math.exp %103 : vector<2x64xf32>
    %cst_50 = arith.constant 1.000000e+00 : f32
    %105 = vector.broadcast %cst_50 : f32 to vector<2x64xf32>
    %106 = arith.addf %105, %104 : vector<2x64xf32>
    %107 = arith.divf %105, %106 : vector<2x64xf32>
    %108 = vector.extract_strided_slice %107 {offsets = [0, 0], sizes = [2, 32], strides = [1, 1]} : vector<2x64xf32> to vector<2x32xf32>
    %109 = vector.extract_strided_slice %107 {offsets = [0, 32], sizes = [2, 32], strides = [1, 1]} : vector<2x64xf32> to vector<2x32xf32>
    %110 = vector.extract_strided_slice %96 {offsets = [0, 64], sizes = [2, 32], strides = [1, 1]} : vector<2x96xf32> to vector<2x32xf32>
    %111 = vector.extract_strided_slice %99 {offsets = [0, 64], sizes = [2, 32], strides = [1, 1]} : vector<2x96xf32> to vector<2x32xf32>
    %112 = arith.mulf %108, %111 : vector<2x32xf32>
    %113 = arith.addf %110, %112 : vector<2x32xf32>
    %114 = math.tanh %113 : vector<2x32xf32>
    %cst_51 = arith.constant 1.000000e+00 : f32
    %115 = vector.broadcast %cst_51 : f32 to vector<2x32xf32>
    %116 = arith.subf %115, %109 : vector<2x32xf32>
    %117 = arith.mulf %116, %114 : vector<2x32xf32>
    %118 = arith.mulf %109, %93 : vector<2x32xf32>
    %119 = arith.addf %117, %118 : vector<2x32xf32>
    %c4 = arith.constant 4 : index
    %c0_52 = arith.constant 0 : index
    %120 = vector.load %arg22[%c4, %c0_52] : memref<10x32xf32, #tpu.memory_space<vmem>>, vector<2x32xf32>
    tpu.vector_store %arg22[%c4, %c0_52], %119 {strides = array<i32>} : memref<10x32xf32, #tpu.memory_space<vmem>>, vector<2x32xf32>,
    %c4_53 = arith.constant 4 : index
    %c0_54 = arith.constant 0 : index
    %121 = vector.load %arg23[%c4_53, %c0_54] : memref<10x32xf32, #tpu.memory_space<vmem>>, vector<2x32xf32>
    tpu.vector_store %arg23[%c4_53, %c0_54], %119 {strides = array<i32>} : memref<10x32xf32, #tpu.memory_space<vmem>>, vector<2x32xf32>,
    %122 = vector.extract_strided_slice %40 {offsets = [6, 0], sizes = [2, 96], strides = [1, 1]} : vector<10x96xf32> to vector<2x96xf32>
    %cst_55 = arith.constant dense<0.000000e+00> : vector<2x96xf32>
    %123 = tpu.matmul %119, %41, %cst_55 {dimension_numbers = #tpu.dot_dimension_numbers<[1], [0], [0], [1], [0, 0, 1, 1], [], []>} : vector<2x32xf32>, vector<32x96xf32>, vector<2x96xf32> -> vector<2x96xf32>
    %124 = vector.broadcast %42 : vector<1x96xf32> to vector<2x96xf32>
    %125 = arith.addf %123, %124 : vector<2x96xf32>
    %126 = vector.extract_strided_slice %122 {offsets = [0, 0], sizes = [2, 64], strides = [1, 1]} : vector<2x96xf32> to vector<2x64xf32>
    %127 = vector.extract_strided_slice %125 {offsets = [0, 0], sizes = [2, 64], strides = [1, 1]} : vector<2x96xf32> to vector<2x64xf32>
    %128 = arith.addf %126, %127 : vector<2x64xf32>
    %129 = arith.negf %128 : vector<2x64xf32>
    %130 = math.exp %129 : vector<2x64xf32>
    %cst_56 = arith.constant 1.000000e+00 : f32
    %131 = vector.broadcast %cst_56 : f32 to vector<2x64xf32>
    %132 = arith.addf %131, %130 : vector<2x64xf32>
    %133 = arith.divf %131, %132 : vector<2x64xf32>
    %134 = vector.extract_strided_slice %133 {offsets = [0, 0], sizes = [2, 32], strides = [1, 1]} : vector<2x64xf32> to vector<2x32xf32>
    %135 = vector.extract_strided_slice %133 {offsets = [0, 32], sizes = [2, 32], strides = [1, 1]} : vector<2x64xf32> to vector<2x32xf32>
    %136 = vector.extract_strided_slice %122 {offsets = [0, 64], sizes = [2, 32], strides = [1, 1]} : vector<2x96xf32> to vector<2x32xf32>
    %137 = vector.extract_strided_slice %125 {offsets = [0, 64], sizes = [2, 32], strides = [1, 1]} : vector<2x96xf32> to vector<2x32xf32>
    %138 = arith.mulf %134, %137 : vector<2x32xf32>
    %139 = arith.addf %136, %138 : vector<2x32xf32>
    %140 = math.tanh %139 : vector<2x32xf32>
    %cst_57 = arith.constant 1.000000e+00 : f32
    %141 = vector.broadcast %cst_57 : f32 to vector<2x32xf32>
    %142 = arith.subf %141, %135 : vector<2x32xf32>
    %143 = arith.mulf %142, %140 : vector<2x32xf32>
    %144 = arith.mulf %135, %119 : vector<2x32xf32>
    %145 = arith.addf %143, %144 : vector<2x32xf32>
    %c6_58 = arith.constant 6 : index
    %c0_59 = arith.constant 0 : index
    %146 = vector.load %arg22[%c6_58, %c0_59] : memref<10x32xf32, #tpu.memory_space<vmem>>, vector<2x32xf32>
    tpu.vector_store %arg22[%c6_58, %c0_59], %145 {strides = array<i32>} : memref<10x32xf32, #tpu.memory_space<vmem>>, vector<2x32xf32>,
    %c2_60 = arith.constant 2 : index
    %c0_61 = arith.constant 0 : index
    %147 = vector.load %arg23[%c2_60, %c0_61] : memref<10x32xf32, #tpu.memory_space<vmem>>, vector<2x32xf32>
    tpu.vector_store %arg23[%c2_60, %c0_61], %145 {strides = array<i32>} : memref<10x32xf32, #tpu.memory_space<vmem>>, vector<2x32xf32>,
    %148 = vector.extract_strided_slice %40 {offsets = [8, 0], sizes = [2, 96], strides = [1, 1]} : vector<10x96xf32> to vector<2x96xf32>
    %cst_62 = arith.constant dense<0.000000e+00> : vector<2x96xf32>
    %149 = tpu.matmul %145, %41, %cst_62 {dimension_numbers = #tpu.dot_dimension_numbers<[1], [0], [0], [1], [0, 0, 1, 1], [], []>} : vector<2x32xf32>, vector<32x96xf32>, vector<2x96xf32> -> vector<2x96xf32>
    %150 = vector.broadcast %42 : vector<1x96xf32> to vector<2x96xf32>
    %151 = arith.addf %149, %150 : vector<2x96xf32>
    %152 = vector.extract_strided_slice %148 {offsets = [0, 0], sizes = [2, 64], strides = [1, 1]} : vector<2x96xf32> to vector<2x64xf32>
    %153 = vector.extract_strided_slice %151 {offsets = [0, 0], sizes = [2, 64], strides = [1, 1]} : vector<2x96xf32> to vector<2x64xf32>
    %154 = arith.addf %152, %153 : vector<2x64xf32>
    %155 = arith.negf %154 : vector<2x64xf32>
    %156 = math.exp %155 : vector<2x64xf32>
    %cst_63 = arith.constant 1.000000e+00 : f32
    %157 = vector.broadcast %cst_63 : f32 to vector<2x64xf32>
    %158 = arith.addf %157, %156 : vector<2x64xf32>
    %159 = arith.divf %157, %158 : vector<2x64xf32>
    %160 = vector.extract_strided_slice %159 {offsets = [0, 0], sizes = [2, 32], strides = [1, 1]} : vector<2x64xf32> to vector<2x32xf32>
    %161 = vector.extract_strided_slice %159 {offsets = [0, 32], sizes = [2, 32], strides = [1, 1]} : vector<2x64xf32> to vector<2x32xf32>
    %162 = vector.extract_strided_slice %148 {offsets = [0, 64], sizes = [2, 32], strides = [1, 1]} : vector<2x96xf32> to vector<2x32xf32>
    %163 = vector.extract_strided_slice %151 {offsets = [0, 64], sizes = [2, 32], strides = [1, 1]} : vector<2x96xf32> to vector<2x32xf32>
    %164 = arith.mulf %160, %163 : vector<2x32xf32>
    %165 = arith.addf %162, %164 : vector<2x32xf32>
    %166 = math.tanh %165 : vector<2x32xf32>
    %cst_64 = arith.constant 1.000000e+00 : f32
    %167 = vector.broadcast %cst_64 : f32 to vector<2x32xf32>
    %168 = arith.subf %167, %161 : vector<2x32xf32>
    %169 = arith.mulf %168, %166 : vector<2x32xf32>
    %170 = arith.mulf %161, %145 : vector<2x32xf32>
    %171 = arith.addf %169, %170 : vector<2x32xf32>
    %c8_65 = arith.constant 8 : index
    %c0_66 = arith.constant 0 : index
    %172 = vector.load %arg22[%c8_65, %c0_66] : memref<10x32xf32, #tpu.memory_space<vmem>>, vector<2x32xf32>
    tpu.vector_store %arg22[%c8_65, %c0_66], %171 {strides = array<i32>} : memref<10x32xf32, #tpu.memory_space<vmem>>, vector<2x32xf32>,
    %c0_67 = arith.constant 0 : index
    %c0_68 = arith.constant 0 : index
    %173 = vector.load %arg23[%c0_67, %c0_68] : memref<10x32xf32, #tpu.memory_space<vmem>>, vector<2x32xf32>
    tpu.vector_store %arg23[%c0_67, %c0_68], %171 {strides = array<i32>} : memref<10x32xf32, #tpu.memory_space<vmem>>, vector<2x32xf32>,
    %c0_69 = arith.constant 0 : index
    %c0_70 = arith.constant 0 : index
    %174 = vector.load %arg22[%c0_69, %c0_70] : memref<10x32xf32, #tpu.memory_space<vmem>>, vector<10x32xf32>
    %c0_71 = arith.constant 0 : index
    %c0_72 = arith.constant 0 : index
    %175 = vector.load %arg13[%c0_71, %c0_72] : memref<32x96xf32, #tpu.memory_space<vmem>>, vector<32x96xf32>
    %cst_73 = arith.constant dense<0.000000e+00> : vector<10x96xf32>
    %176 = tpu.matmul %174, %175, %cst_73 {dimension_numbers = #tpu.dot_dimension_numbers<[1], [0], [0], [1], [0, 0, 1, 1], [], []>} : vector<10x32xf32>, vector<32x96xf32>, vector<10x96xf32> -> vector<10x96xf32>
    %c0_74 = arith.constant 0 : index
    %c0_75 = arith.constant 0 : index
    %177 = vector.load %arg23[%c0_74, %c0_75] : memref<10x32xf32, #tpu.memory_space<vmem>>, vector<10x32xf32>
    %c0_76 = arith.constant 0 : index
    %c0_77 = arith.constant 0 : index
    %178 = vector.load %arg14[%c0_76, %c0_77] : memref<32x96xf32, #tpu.memory_space<vmem>>, vector<32x96xf32>
    %cst_78 = arith.constant dense<0.000000e+00> : vector<10x96xf32>
    %179 = tpu.matmul %177, %178, %cst_78 {dimension_numbers = #tpu.dot_dimension_numbers<[1], [0], [0], [1], [0, 0, 1, 1], [], []>} : vector<10x32xf32>, vector<32x96xf32>, vector<10x96xf32> -> vector<10x96xf32>
    %180 = arith.addf %176, %179 : vector<10x96xf32>
    %c0_79 = arith.constant 0 : index
    %c0_80 = arith.constant 0 : index
    %181 = vector.load %arg15[%c0_79, %c0_80] : memref<1x96xf32, #tpu.memory_space<vmem>>, vector<1x96xf32>
    %182 = vector.broadcast %181 : vector<1x96xf32> to vector<10x96xf32>
    %183 = arith.addf %180, %182 : vector<10x96xf32>
    %c0_81 = arith.constant 0 : index
    %c0_82 = arith.constant 0 : index
    %184 = vector.load %arg16[%c0_81, %c0_82] : memref<32x96xf32, #tpu.memory_space<vmem>>, vector<32x96xf32>
    %c0_83 = arith.constant 0 : index
    %c0_84 = arith.constant 0 : index
    %185 = vector.load %arg17[%c0_83, %c0_84] : memref<1x96xf32, #tpu.memory_space<vmem>>, vector<1x96xf32>
    %c0_85 = arith.constant 0 : index
    %c0_86 = arith.constant 0 : index
    %186 = vector.load %arg18[%c0_85, %c0_86] : memref<5x32xf32, #tpu.memory_space<vmem>>, vector<5x32xf32>
    %cst_87 = arith.constant 0.000000e+00 : f32
    %187 = vector.broadcast %cst_87 : f32 to vector<2x32xf32>
    %188 = vector.extract_strided_slice %183 {offsets = [0, 0], sizes = [2, 96], strides = [1, 1]} : vector<10x96xf32> to vector<2x96xf32>
    %cst_88 = arith.constant dense<0.000000e+00> : vector<2x96xf32>
    %189 = tpu.matmul %187, %184, %cst_88 {dimension_numbers = #tpu.dot_dimension_numbers<[1], [0], [0], [1], [0, 0, 1, 1], [], []>} : vector<2x32xf32>, vector<32x96xf32>, vector<2x96xf32> -> vector<2x96xf32>
    %190 = vector.broadcast %185 : vector<1x96xf32> to vector<2x96xf32>
    %191 = arith.addf %189, %190 : vector<2x96xf32>
    %192 = vector.extract_strided_slice %188 {offsets = [0, 0], sizes = [2, 64], strides = [1, 1]} : vector<2x96xf32> to vector<2x64xf32>
    %193 = vector.extract_strided_slice %191 {offsets = [0, 0], sizes = [2, 64], strides = [1, 1]} : vector<2x96xf32> to vector<2x64xf32>
    %194 = arith.addf %192, %193 : vector<2x64xf32>
    %195 = arith.negf %194 : vector<2x64xf32>
    %196 = math.exp %195 : vector<2x64xf32>
    %cst_89 = arith.constant 1.000000e+00 : f32
    %197 = vector.broadcast %cst_89 : f32 to vector<2x64xf32>
    %198 = arith.addf %197, %196 : vector<2x64xf32>
    %199 = arith.divf %197, %198 : vector<2x64xf32>
    %200 = vector.extract_strided_slice %199 {offsets = [0, 0], sizes = [2, 32], strides = [1, 1]} : vector<2x64xf32> to vector<2x32xf32>
    %201 = vector.extract_strided_slice %199 {offsets = [0, 32], sizes = [2, 32], strides = [1, 1]} : vector<2x64xf32> to vector<2x32xf32>
    %202 = vector.extract_strided_slice %188 {offsets = [0, 64], sizes = [2, 32], strides = [1, 1]} : vector<2x96xf32> to vector<2x32xf32>
    %203 = vector.extract_strided_slice %191 {offsets = [0, 64], sizes = [2, 32], strides = [1, 1]} : vector<2x96xf32> to vector<2x32xf32>
    %204 = arith.mulf %200, %203 : vector<2x32xf32>
    %205 = arith.addf %202, %204 : vector<2x32xf32>
    %206 = math.tanh %205 : vector<2x32xf32>
    %cst_90 = arith.constant 1.000000e+00 : f32
    %207 = vector.broadcast %cst_90 : f32 to vector<2x32xf32>
    %208 = arith.subf %207, %201 : vector<2x32xf32>
    %209 = arith.mulf %208, %206 : vector<2x32xf32>
    %210 = arith.mulf %201, %187 : vector<2x32xf32>
    %211 = arith.addf %209, %210 : vector<2x32xf32>
    %212 = vector.extract_strided_slice %186 {offsets = [0, 0], sizes = [1, 32], strides = [1, 1]} : vector<5x32xf32> to vector<1x32xf32>
    %213 = vector.broadcast %212 : vector<1x32xf32> to vector<2x32xf32>
    %214 = arith.mulf %211, %213 : vector<2x32xf32>
    %cst_91 = arith.constant dense<0.000000e+00> : vector<2xf32>
    %215 = vector.multi_reduction <add>, %214, %cst_91 [1] : vector<2x32xf32> to vector<2xf32>
    %216 = vector.shape_cast %215 : vector<2xf32> to vector<2x1xf32>
    %217 = arith.addf %22, %216 : vector<2x1xf32>
    %218 = vector.extract_strided_slice %183 {offsets = [2, 0], sizes = [2, 96], strides = [1, 1]} : vector<10x96xf32> to vector<2x96xf32>
    %cst_92 = arith.constant dense<0.000000e+00> : vector<2x96xf32>
    %219 = tpu.matmul %211, %184, %cst_92 {dimension_numbers = #tpu.dot_dimension_numbers<[1], [0], [0], [1], [0, 0, 1, 1], [], []>} : vector<2x32xf32>, vector<32x96xf32>, vector<2x96xf32> -> vector<2x96xf32>
    %220 = vector.broadcast %185 : vector<1x96xf32> to vector<2x96xf32>
    %221 = arith.addf %219, %220 : vector<2x96xf32>
    %222 = vector.extract_strided_slice %218 {offsets = [0, 0], sizes = [2, 64], strides = [1, 1]} : vector<2x96xf32> to vector<2x64xf32>
    %223 = vector.extract_strided_slice %221 {offsets = [0, 0], sizes = [2, 64], strides = [1, 1]} : vector<2x96xf32> to vector<2x64xf32>
    %224 = arith.addf %222, %223 : vector<2x64xf32>
    %225 = arith.negf %224 : vector<2x64xf32>
    %226 = math.exp %225 : vector<2x64xf32>
    %cst_93 = arith.constant 1.000000e+00 : f32
    %227 = vector.broadcast %cst_93 : f32 to vector<2x64xf32>
    %228 = arith.addf %227, %226 : vector<2x64xf32>
    %229 = arith.divf %227, %228 : vector<2x64xf32>
    %230 = vector.extract_strided_slice %229 {offsets = [0, 0], sizes = [2, 32], strides = [1, 1]} : vector<2x64xf32> to vector<2x32xf32>
    %231 = vector.extract_strided_slice %229 {offsets = [0, 32], sizes = [2, 32], strides = [1, 1]} : vector<2x64xf32> to vector<2x32xf32>
    %232 = vector.extract_strided_slice %218 {offsets = [0, 64], sizes = [2, 32], strides = [1, 1]} : vector<2x96xf32> to vector<2x32xf32>
    %233 = vector.extract_strided_slice %221 {offsets = [0, 64], sizes = [2, 32], strides = [1, 1]} : vector<2x96xf32> to vector<2x32xf32>
    %234 = arith.mulf %230, %233 : vector<2x32xf32>
    %235 = arith.addf %232, %234 : vector<2x32xf32>
    %236 = math.tanh %235 : vector<2x32xf32>
    %cst_94 = arith.constant 1.000000e+00 : f32
    %237 = vector.broadcast %cst_94 : f32 to vector<2x32xf32>
    %238 = arith.subf %237, %231 : vector<2x32xf32>
    %239 = arith.mulf %238, %236 : vector<2x32xf32>
    %240 = arith.mulf %231, %211 : vector<2x32xf32>
    %241 = arith.addf %239, %240 : vector<2x32xf32>
    %242 = vector.extract_strided_slice %186 {offsets = [1, 0], sizes = [1, 32], strides = [1, 1]} : vector<5x32xf32> to vector<1x32xf32>
    %243 = vector.broadcast %242 : vector<1x32xf32> to vector<2x32xf32>
    %244 = arith.mulf %241, %243 : vector<2x32xf32>
    %cst_95 = arith.constant dense<0.000000e+00> : vector<2xf32>
    %245 = vector.multi_reduction <add>, %244, %cst_95 [1] : vector<2x32xf32> to vector<2xf32>
    %246 = vector.shape_cast %245 : vector<2xf32> to vector<2x1xf32>
    %247 = arith.addf %217, %246 : vector<2x1xf32>
    %248 = vector.extract_strided_slice %183 {offsets = [4, 0], sizes = [2, 96], strides = [1, 1]} : vector<10x96xf32> to vector<2x96xf32>
    %cst_96 = arith.constant dense<0.000000e+00> : vector<2x96xf32>
    %249 = tpu.matmul %241, %184, %cst_96 {dimension_numbers = #tpu.dot_dimension_numbers<[1], [0], [0], [1], [0, 0, 1, 1], [], []>} : vector<2x32xf32>, vector<32x96xf32>, vector<2x96xf32> -> vector<2x96xf32>
    %250 = vector.broadcast %185 : vector<1x96xf32> to vector<2x96xf32>
    %251 = arith.addf %249, %250 : vector<2x96xf32>
    %252 = vector.extract_strided_slice %248 {offsets = [0, 0], sizes = [2, 64], strides = [1, 1]} : vector<2x96xf32> to vector<2x64xf32>
    %253 = vector.extract_strided_slice %251 {offsets = [0, 0], sizes = [2, 64], strides = [1, 1]} : vector<2x96xf32> to vector<2x64xf32>
    %254 = arith.addf %252, %253 : vector<2x64xf32>
    %255 = arith.negf %254 : vector<2x64xf32>
    %256 = math.exp %255 : vector<2x64xf32>
    %cst_97 = arith.constant 1.000000e+00 : f32
    %257 = vector.broadcast %cst_97 : f32 to vector<2x64xf32>
    %258 = arith.addf %257, %256 : vector<2x64xf32>
    %259 = arith.divf %257, %258 : vector<2x64xf32>
    %260 = vector.extract_strided_slice %259 {offsets = [0, 0], sizes = [2, 32], strides = [1, 1]} : vector<2x64xf32> to vector<2x32xf32>
    %261 = vector.extract_strided_slice %259 {offsets = [0, 32], sizes = [2, 32], strides = [1, 1]} : vector<2x64xf32> to vector<2x32xf32>
    %262 = vector.extract_strided_slice %248 {offsets = [0, 64], sizes = [2, 32], strides = [1, 1]} : vector<2x96xf32> to vector<2x32xf32>
    %263 = vector.extract_strided_slice %251 {offsets = [0, 64], sizes = [2, 32], strides = [1, 1]} : vector<2x96xf32> to vector<2x32xf32>
    %264 = arith.mulf %260, %263 : vector<2x32xf32>
    %265 = arith.addf %262, %264 : vector<2x32xf32>
    %266 = math.tanh %265 : vector<2x32xf32>
    %cst_98 = arith.constant 1.000000e+00 : f32
    %267 = vector.broadcast %cst_98 : f32 to vector<2x32xf32>
    %268 = arith.subf %267, %261 : vector<2x32xf32>
    %269 = arith.mulf %268, %266 : vector<2x32xf32>
    %270 = arith.mulf %261, %241 : vector<2x32xf32>
    %271 = arith.addf %269, %270 : vector<2x32xf32>
    %272 = vector.extract_strided_slice %186 {offsets = [2, 0], sizes = [1, 32], strides = [1, 1]} : vector<5x32xf32> to vector<1x32xf32>
    %273 = vector.broadcast %272 : vector<1x32xf32> to vector<2x32xf32>
    %274 = arith.mulf %271, %273 : vector<2x32xf32>
    %cst_99 = arith.constant dense<0.000000e+00> : vector<2xf32>
    %275 = vector.multi_reduction <add>, %274, %cst_99 [1] : vector<2x32xf32> to vector<2xf32>
    %276 = vector.shape_cast %275 : vector<2xf32> to vector<2x1xf32>
    %277 = arith.addf %247, %276 : vector<2x1xf32>
    %278 = vector.extract_strided_slice %183 {offsets = [6, 0], sizes = [2, 96], strides = [1, 1]} : vector<10x96xf32> to vector<2x96xf32>
    %cst_100 = arith.constant dense<0.000000e+00> : vector<2x96xf32>
    %279 = tpu.matmul %271, %184, %cst_100 {dimension_numbers = #tpu.dot_dimension_numbers<[1], [0], [0], [1], [0, 0, 1, 1], [], []>} : vector<2x32xf32>, vector<32x96xf32>, vector<2x96xf32> -> vector<2x96xf32>
    %280 = vector.broadcast %185 : vector<1x96xf32> to vector<2x96xf32>
    %281 = arith.addf %279, %280 : vector<2x96xf32>
    %282 = vector.extract_strided_slice %278 {offsets = [0, 0], sizes = [2, 64], strides = [1, 1]} : vector<2x96xf32> to vector<2x64xf32>
    %283 = vector.extract_strided_slice %281 {offsets = [0, 0], sizes = [2, 64], strides = [1, 1]} : vector<2x96xf32> to vector<2x64xf32>
    %284 = arith.addf %282, %283 : vector<2x64xf32>
    %285 = arith.negf %284 : vector<2x64xf32>
    %286 = math.exp %285 : vector<2x64xf32>
    %cst_101 = arith.constant 1.000000e+00 : f32
    %287 = vector.broadcast %cst_101 : f32 to vector<2x64xf32>
    %288 = arith.addf %287, %286 : vector<2x64xf32>
    %289 = arith.divf %287, %288 : vector<2x64xf32>
    %290 = vector.extract_strided_slice %289 {offsets = [0, 0], sizes = [2, 32], strides = [1, 1]} : vector<2x64xf32> to vector<2x32xf32>
    %291 = vector.extract_strided_slice %289 {offsets = [0, 32], sizes = [2, 32], strides = [1, 1]} : vector<2x64xf32> to vector<2x32xf32>
    %292 = vector.extract_strided_slice %278 {offsets = [0, 64], sizes = [2, 32], strides = [1, 1]} : vector<2x96xf32> to vector<2x32xf32>
    %293 = vector.extract_strided_slice %281 {offsets = [0, 64], sizes = [2, 32], strides = [1, 1]} : vector<2x96xf32> to vector<2x32xf32>
    %294 = arith.mulf %290, %293 : vector<2x32xf32>
    %295 = arith.addf %292, %294 : vector<2x32xf32>
    %296 = math.tanh %295 : vector<2x32xf32>
    %cst_102 = arith.constant 1.000000e+00 : f32
    %297 = vector.broadcast %cst_102 : f32 to vector<2x32xf32>
    %298 = arith.subf %297, %291 : vector<2x32xf32>
    %299 = arith.mulf %298, %296 : vector<2x32xf32>
    %300 = arith.mulf %291, %271 : vector<2x32xf32>
    %301 = arith.addf %299, %300 : vector<2x32xf32>
    %302 = vector.extract_strided_slice %186 {offsets = [3, 0], sizes = [1, 32], strides = [1, 1]} : vector<5x32xf32> to vector<1x32xf32>
    %303 = vector.broadcast %302 : vector<1x32xf32> to vector<2x32xf32>
    %304 = arith.mulf %301, %303 : vector<2x32xf32>
    %cst_103 = arith.constant dense<0.000000e+00> : vector<2xf32>
    %305 = vector.multi_reduction <add>, %304, %cst_103 [1] : vector<2x32xf32> to vector<2xf32>
    %306 = vector.shape_cast %305 : vector<2xf32> to vector<2x1xf32>
    %307 = arith.addf %277, %306 : vector<2x1xf32>
    %308 = vector.extract_strided_slice %183 {offsets = [8, 0], sizes = [2, 96], strides = [1, 1]} : vector<10x96xf32> to vector<2x96xf32>
    %cst_104 = arith.constant dense<0.000000e+00> : vector<2x96xf32>
    %309 = tpu.matmul %301, %184, %cst_104 {dimension_numbers = #tpu.dot_dimension_numbers<[1], [0], [0], [1], [0, 0, 1, 1], [], []>} : vector<2x32xf32>, vector<32x96xf32>, vector<2x96xf32> -> vector<2x96xf32>
    %310 = vector.broadcast %185 : vector<1x96xf32> to vector<2x96xf32>
    %311 = arith.addf %309, %310 : vector<2x96xf32>
    %312 = vector.extract_strided_slice %308 {offsets = [0, 0], sizes = [2, 64], strides = [1, 1]} : vector<2x96xf32> to vector<2x64xf32>
    %313 = vector.extract_strided_slice %311 {offsets = [0, 0], sizes = [2, 64], strides = [1, 1]} : vector<2x96xf32> to vector<2x64xf32>
    %314 = arith.addf %312, %313 : vector<2x64xf32>
    %315 = arith.negf %314 : vector<2x64xf32>
    %316 = math.exp %315 : vector<2x64xf32>
    %cst_105 = arith.constant 1.000000e+00 : f32
    %317 = vector.broadcast %cst_105 : f32 to vector<2x64xf32>
    %318 = arith.addf %317, %316 : vector<2x64xf32>
    %319 = arith.divf %317, %318 : vector<2x64xf32>
    %320 = vector.extract_strided_slice %319 {offsets = [0, 0], sizes = [2, 32], strides = [1, 1]} : vector<2x64xf32> to vector<2x32xf32>
    %321 = vector.extract_strided_slice %319 {offsets = [0, 32], sizes = [2, 32], strides = [1, 1]} : vector<2x64xf32> to vector<2x32xf32>
    %322 = vector.extract_strided_slice %308 {offsets = [0, 64], sizes = [2, 32], strides = [1, 1]} : vector<2x96xf32> to vector<2x32xf32>
    %323 = vector.extract_strided_slice %311 {offsets = [0, 64], sizes = [2, 32], strides = [1, 1]} : vector<2x96xf32> to vector<2x32xf32>
    %324 = arith.mulf %320, %323 : vector<2x32xf32>
    %325 = arith.addf %322, %324 : vector<2x32xf32>
    %326 = math.tanh %325 : vector<2x32xf32>
    %cst_106 = arith.constant 1.000000e+00 : f32
    %327 = vector.broadcast %cst_106 : f32 to vector<2x32xf32>
    %328 = arith.subf %327, %321 : vector<2x32xf32>
    %329 = arith.mulf %328, %326 : vector<2x32xf32>
    %330 = arith.mulf %321, %301 : vector<2x32xf32>
    %331 = arith.addf %329, %330 : vector<2x32xf32>
    %332 = vector.extract_strided_slice %186 {offsets = [4, 0], sizes = [1, 32], strides = [1, 1]} : vector<5x32xf32> to vector<1x32xf32>
    %333 = vector.broadcast %332 : vector<1x32xf32> to vector<2x32xf32>
    %334 = arith.mulf %331, %333 : vector<2x32xf32>
    %cst_107 = arith.constant dense<0.000000e+00> : vector<2xf32>
    %335 = vector.multi_reduction <add>, %334, %cst_107 [1] : vector<2x32xf32> to vector<2xf32>
    %336 = vector.shape_cast %335 : vector<2xf32> to vector<2x1xf32>
    %337 = arith.addf %307, %336 : vector<2x1xf32>
    %c0_108 = arith.constant 0 : index
    %c0_109 = arith.constant 0 : index
    %338 = vector.load %arg21[%c0_108, %c0_109] : memref<2x1xf32, #tpu.memory_space<vmem>>, vector<2x1xf32>
    tpu.vector_store %arg21[%c0_108, %c0_109], %337 {strides = array<i32>} : memref<2x1xf32, #tpu.memory_space<vmem>>, vector<2x1xf32>,
    return
  }
}

</mosaic_0001>

<llo_original>
// kernel: grub_forward.1
$region0: #{grub_forward.1}
  #allocation0 [shape = 'u32[]', space=smem, size = 0x4, offset = 0x4, fixed_abs, tag = 'smem constant byte address 0x4 - core index']
  #allocation1 [shape = 'u32[144,128]{1,0:T(1,128)}', space=vmem, size = 0x12000, scoped, tag = 'internal scratch']
  #allocation2 [shape = 'f32[10,32]{1,0:T(8,128)}', space=vmem, size = 0x2000, scoped, tag = 'scratch operand']
  #allocation3 [shape = 'f32[10,32]{1,0:T(8,128)}', space=vmem, size = 0x2000, scoped, tag = 'scratch operand']
  #allocation4 [shape = 'f32[1,1]{1,0:T(1,128)S(1)}', space=vmem, size = 0x200, scoped, tag = 'scoped memory for grub_forward.1']
  %s0 = inlined_call_operand.vmem [shape: f32[20,68], index: 0, kind: input, shape index: {}]
  %s1 = inlined_call_operand.vmem [shape: f32[2,12], index: 1, kind: input, shape index: {}]
  %s2 = inlined_call_operand.vmem [shape: f32[12,100], index: 2, kind: input, shape index: {}]
  %s3 = inlined_call_operand.vmem [shape: f32[1,100], index: 3, kind: input, shape index: {}]
  %s4 = inlined_call_operand.vmem [shape: f32[100,83], index: 4, kind: input, shape index: {}]
  %s5 = inlined_call_operand.vmem [shape: f32[1,83], index: 5, kind: input, shape index: {}]
  %s6 = inlined_call_operand.vmem [shape: f32[68,50], index: 6, kind: input, shape index: {}]
  %s7 = inlined_call_operand.vmem [shape: f32[1,50], index: 7, kind: input, shape index: {}]
  %s8 = inlined_call_operand.vmem [shape: f32[50,96], index: 8, kind: input, shape index: {}]
  %s9 = inlined_call_operand.vmem [shape: f32[50,96], index: 9, kind: input, shape index: {}]
  %s10 = inlined_call_operand.vmem [shape: f32[1,96], index: 10, kind: input, shape index: {}]
  %s11 = inlined_call_operand.vmem [shape: f32[32,96], index: 11, kind: input, shape index: {}]
  %s12 = inlined_call_operand.vmem [shape: f32[1,96], index: 12, kind: input, shape index: {}]
  %s13 = inlined_call_operand.vmem [shape: f32[32,96], index: 13, kind: input, shape index: {}]
  %s14 = inlined_call_operand.vmem [shape: f32[32,96], index: 14, kind: input, shape index: {}]
  %s15 = inlined_call_operand.vmem [shape: f32[1,96], index: 15, kind: input, shape index: {}]
  %s16 = inlined_call_operand.vmem [shape: f32[32,96], index: 16, kind: input, shape index: {}]
  %s17 = inlined_call_operand.vmem [shape: f32[1,96], index: 17, kind: input, shape index: {}]
  %s18 = inlined_call_operand.vmem [shape: f32[5,32], index: 18, kind: input, shape index: {}]
  %s19 = inlined_call_operand.vmem [shape: f32[1,83], index: 19, kind: input, shape index: {}]
  %s20 = inlined_call_operand.<no memory space> [shape: f32[1,1], index: 20, kind: input, shape index: {}]
  %s21 = inlined_call_operand.vmem [shape: f32[2,1], index: 21, kind: output, shape index: {}]
  %s22 = sld [smem:[#allocation0]]
  $region94: #{grub_forward.1} parent=0
    _
  %s24 = ssub.s32 1, %s22
  %s25 = scalar_select 0, %s24, %s22
  %v26 = vstv %s20
  %27 = vst [vmem:[#allocation4] sm:$0x1] %v26
  // Predicated region
  $region2: #{grub_forward.1} parent=0 // pred_check
    _
  $region3: #{grub_forward.1} parent=0 // pred_check_branch
    %29 = sbr.rel (0) target = $region5
  $region4: #{grub_forward.1} parent=0 // pred_region
    _
  $region5: #{grub_forward.1} parent=0 // pred_fallthru
    _
  // Predicated region
  $region6: #{grub_forward.1} parent=0 // pred_check
    _
  $region7: #{grub_forward.1} parent=0 // pred_check_branch
    %31 = sbr.rel (0) target = $region9
  $region8: #{grub_forward.1} parent=0 // pred_region
    _
  $region9: #{grub_forward.1} parent=0 // pred_fallthru
    _
  // Predicated region
  $region10: #{grub_forward.1} parent=0 // pred_check
    _
  $region11: #{grub_forward.1} parent=0 // pred_check_branch
    %33 = sbr.rel (0) target = $region13
  $region12: #{grub_forward.1} parent=0 // pred_region
    _
  $region13: #{grub_forward.1} parent=0 // pred_fallthru
    _
  // Predicated region
  $region14: #{grub_forward.1} parent=0 // pred_check
    _
  $region15: #{grub_forward.1} parent=0 // pred_check_branch
    %35 = sbr.rel (0) target = $region17
  $region16: #{grub_forward.1} parent=0 // pred_region
    _
  $region17: #{grub_forward.1} parent=0 // pred_fallthru
    _
  // Predicated region
  $region18: #{grub_forward.1} parent=0 // pred_check
    _
  $region19: #{grub_forward.1} parent=0 // pred_check_branch
    %37 = sbr.rel (0) target = $region21
  $region20: #{grub_forward.1} parent=0 // pred_region
    _
  $region21: #{grub_forward.1} parent=0 // pred_fallthru
    _
  // Predicated region
  $region22: #{grub_forward.1} parent=0 // pred_check
    _
  $region23: #{grub_forward.1} parent=0 // pred_check_branch
    %39 = sbr.rel (0) target = $region25
  $region24: #{grub_forward.1} parent=0 // pred_region
    _
  $region25: #{grub_forward.1} parent=0 // pred_fallthru
    _
  // Predicated region
  $region26: #{grub_forward.1} parent=0 // pred_check
    _
  $region27: #{grub_forward.1} parent=0 // pred_check_branch
    %41 = sbr.rel (0) target = $region29
  $region28: #{grub_forward.1} parent=0 // pred_region
    _
  $region29: #{grub_forward.1} parent=0 // pred_fallthru
    _
  // Predicated region
  $region30: #{grub_forward.1} parent=0 // pred_check
    _
  $region31: #{grub_forward.1} parent=0 // pred_check_branch
    %43 = sbr.rel (0) target = $region33
  $region32: #{grub_forward.1} parent=0 // pred_region
    _
  $region33: #{grub_forward.1} parent=0 // pred_fallthru
    _
  // Predicated region
  $region34: #{grub_forward.1} parent=0 // pred_check
    _
  $region35: #{grub_forward.1} parent=0 // pred_check_branch
    %45 = sbr.rel (0) target = $region37
  $region36: #{grub_forward.1} parent=0 // pred_region
    _
  $region37: #{grub_forward.1} parent=0 // pred_fallthru
    _
  // Predicated region
  $region38: #{grub_forward.1} parent=0 // pred_check
    _
  $region39: #{grub_forward.1} parent=0 // pred_check_branch
    %47 = sbr.rel (0) target = $region41
  $region40: #{grub_forward.1} parent=0 // pred_region
    _
  $region41: #{grub_forward.1} parent=0 // pred_fallthru
    _
  // Predicated region
  $region42: #{grub_forward.1} parent=0 // pred_check
    _
  $region43: #{grub_forward.1} parent=0 // pred_check_branch
    %49 = sbr.rel (0) target = $region45
  $region44: #{grub_forward.1} parent=0 // pred_region
    _
  $region45: #{grub_forward.1} parent=0 // pred_fallthru
    _
  // Predicated region
  $region46: #{grub_forward.1} parent=0 // pred_check
    _
  $region47: #{grub_forward.1} parent=0 // pred_check_branch
    %51 = sbr.rel (0) target = $region49
  $region48: #{grub_forward.1} parent=0 // pred_region
    _
  $region49: #{grub_forward.1} parent=0 // pred_fallthru
    _
  // Predicated region
  $region50: #{grub_forward.1} parent=0 // pred_check
    _
  $region51: #{grub_forward.1} parent=0 // pred_check_branch
    %53 = sbr.rel (0) target = $region53
  $region52: #{grub_forward.1} parent=0 // pred_region
    _
  $region53: #{grub_forward.1} parent=0 // pred_fallthru
    _
  // Predicated region
  $region54: #{grub_forward.1} parent=0 // pred_check
    _
  $region55: #{grub_forward.1} parent=0 // pred_check_branch
    %55 = sbr.rel (0) target = $region57
  $region56: #{grub_forward.1} parent=0 // pred_region
    _
  $region57: #{grub_forward.1} parent=0 // pred_fallthru
    _
  // Predicated region
  $region58: #{grub_forward.1} parent=0 // pred_check
    _
  $region59: #{grub_forward.1} parent=0 // pred_check_branch
    %57 = sbr.rel (0) target = $region61
  $region60: #{grub_forward.1} parent=0 // pred_region
    _
  $region61: #{grub_forward.1} parent=0 // pred_fallthru
    _
  // Predicated region
  $region62: #{grub_forward.1} parent=0 // pred_check
    _
  $region63: #{grub_forward.1} parent=0 // pred_check_branch
    %59 = sbr.rel (0) target = $region65
  $region64: #{grub_forward.1} parent=0 // pred_region
    _
  $region65: #{grub_forward.1} parent=0 // pred_fallthru
    _
  // Predicated region
  $region66: #{grub_forward.1} parent=0 // pred_check
    _
  $region67: #{grub_forward.1} parent=0 // pred_check_branch
    %61 = sbr.rel (0) target = $region69
  $region68: #{grub_forward.1} parent=0 // pred_region
    _
  $region69: #{grub_forward.1} parent=0 // pred_fallthru
    _
  // Predicated region
  $region70: #{grub_forward.1} parent=0 // pred_check
    _
  $region71: #{grub_forward.1} parent=0 // pred_check_branch
    %63 = sbr.rel (0) target = $region73
  $region72: #{grub_forward.1} parent=0 // pred_region
    _
  $region73: #{grub_forward.1} parent=0 // pred_fallthru
    _
  // Predicated region
  $region74: #{grub_forward.1} parent=0 // pred_check
    _
  $region75: #{grub_forward.1} parent=0 // pred_check_branch
    %65 = sbr.rel (0) target = $region77
  $region76: #{grub_forward.1} parent=0 // pred_region
    _
  $region77: #{grub_forward.1} parent=0 // pred_fallthru
    _
  // Predicated region
  $region78: #{grub_forward.1} parent=0 // pred_check
    _
  $region79: #{grub_forward.1} parent=0 // pred_check_branch
    %67 = sbr.rel (0) target = $region81
  $region80: #{grub_forward.1} parent=0 // pred_region
    _
  $region81: #{grub_forward.1} parent=0 // pred_fallthru
    _
  // Predicated region
  $region82: #{grub_forward.1} parent=0 // pred_check
    _
  $region83: #{grub_forward.1} parent=0 // pred_check_branch
    %69 = sbr.rel (0) target = $region85
  $region84: #{grub_forward.1} parent=0 // pred_region
    _
  $region85: #{grub_forward.1} parent=0 // pred_fallthru
    _
  %v70 = vld [vmem:[%s1] sm:$0x3]
  %v71 = vld [vmem:[%s2] sm:$0xff]
  %v72 = vld [vmem:[%s2 + $0x8] sm:$0xf]
  %v73 = vld [vmem:[%s3] sm:$0x1]
  %v75 = vlaneseq
  %v76 = vshrl.u32 %v75, 7
  %v77 = vsub.s32 0, %v76
  %v78 = vrot.slane %v73, %v77
  %vm80 = vcmask 97280
  %v82 = vsel %vm80, %v70, 0
  %vm84 = vcmask 1043456
  %v86 = vsel %vm84, %v72, 0
  %88 = vmatprep.subr.mxu0 0.0
  %89 = vmatpush1.msra.mxu0 %v71
  %90 = vmatprep.subr.mxu0 0.0
  %91 = vmatpush1.msra.mxu0 %v86
  %92 = vmatprep.subr.mxu0 0.0
  %93 = vmatpush1.msra.mxu0 0.0
  %94 = vmatprep.subr.mxu0 0.0
  %95 = vmatpush1.msra.mxu0 0.0
  %96 = vmatprep.subr.mxu0 0.0
  %97 = vmatpush1.msra.mxu0 0.0
  %98 = vmatprep.subr.mxu0 0.0
  %99 = vmatpush1.msra.mxu0 0.0
  %100 = vmatprep.subr.mxu0 0.0
  %101 = vmatpush1.msra.mxu0 0.0
  %102 = vmatprep.subr.mxu0 0.0
  %103 = vmatpush1.msra.mxu0 0.0
  %104 = vmatprep.subr.mxu0 0.0
  %105 = vmatpush1.msra.mxu0 0.0
  %106 = vmatprep.subr.mxu0 0.0
  %107 = vmatpush1.msra.mxu0 0.0
  %108 = vmatprep.subr.mxu0 0.0
  %109 = vmatpush1.msra.mxu0 0.0
  %110 = vmatprep.subr.mxu0 0.0
  %111 = vmatpush1.msra.mxu0 0.0
  %112 = vmatprep.subr.mxu0 0.0
  %113 = vmatpush1.msra.mxu0 0.0
  %114 = vmatprep.subr.mxu0 0.0
  %115 = vmatpush1.msra.mxu0 0.0
  %116 = vmatprep.subr.mxu0 0.0
  %117 = vmatpush1.msra.mxu0 0.0
  %118 = vmatprep.subr.mxu0 0.0
  %119 = vmatpush1.msra.mxu0 0.0
  %120 = vmatprep.subr.mxu0 0.0
  %121 = vmatpush1.msra.mxu0 0.0
  %122 = vmatprep.subr.mxu0 0.0
  %123 = vmatpush1.msra.mxu0 0.0
  %124 = vmatprep.subr.mxu0 0.0
  %125 = vmatpush1.msra.mxu0 0.0
  %126 = vmatprep.subr.mxu0 0.0
  %127 = vmatpush1.msra.mxu0 0.0
  %128 = vmatprep.subr.mxu0 0.0
  %129 = vmatpush1.msra.mxu0 0.0
  %130 = vmatprep.subr.mxu0 0.0
  %131 = vmatpush1.msra.mxu0 0.0
  %132 = vmatprep.subr.mxu0 0.0
  %133 = vmatpush1.msra.mxu0 0.0
  %134 = vmatprep.subr.mxu0 0.0
  %135 = vmatpush1.msra.mxu0 0.0
  %136 = vmatprep.subr.mxu0 0.0
  %137 = vmatpush1.msra.mxu0 0.0
  %138 = vmatprep.subr.mxu0 0.0
  %139 = vmatpush1.msra.mxu0 0.0
  %140 = vmatprep.subr.mxu0 0.0
  %141 = vmatpush1.msra.mxu0 0.0
  %142 = vmatprep.subr.mxu0 0.0
  %143 = vmatpush1.msra.mxu0 0.0
  %144 = vmatprep.subr.mxu0 0.0
  %145 = vmatpush1.msra.mxu0 0.0
  %146 = vmatprep.subr.mxu0 0.0
  %147 = vmatpush1.msra.mxu0 0.0
  %148 = vmatprep.subr.mxu0 0.0
  %149 = vmatpush1.msra.mxu0 0.0
  %150 = vmatprep.subr.mxu0 0.0
  %151 = vmatpush1.msra.mxu0 0.0
  %152 = vmatprep.mubr.f32.mxu0 0.0
  %153 = vmatmul.mubr.f32.gmra.mrb[0].mxu0 %v82
  %v154 = vpop.f32.mrb[0].mxu0
  %v155 = vadd.f32 %v78, %v154
  %v156 = vpop.f32.mrb[0].mxu0
  %157 = vdwg.mxu0
  %v158 = vmax.f32 %v155, 0.0
  %v159 = vld [vmem:[%s4] sm:$0xff]
  %v160 = vld [vmem:[%s4 + $0x8] sm:$0xff]
  %v161 = vld [vmem:[%s4 + $0x10] sm:$0xff]
  %v162 = vld [vmem:[%s4 + $0x18] sm:$0xff]
  %v163 = vld [vmem:[%s4 + $0x20] sm:$0xff]
  %v164 = vld [vmem:[%s4 + $0x28] sm:$0xff]
  %v165 = vld [vmem:[%s4 + $0x30] sm:$0xff]
  %v166 = vld [vmem:[%s4 + $0x38] sm:$0xff]
  %v167 = vld [vmem:[%s4 + $0x40] sm:$0xff]
  %v168 = vld [vmem:[%s4 + $0x48] sm:$0xff]
  %v169 = vld [vmem:[%s4 + $0x50] sm:$0xff]
  %v170 = vld [vmem:[%s4 + $0x58] sm:$0xff]
  %v171 = vld [vmem:[%s4 + $0x60] sm:$0xf]
  %v172 = vld [vmem:[%s5] sm:$0x1]
  %v174 = vlaneseq
  %v175 = vshrl.u32 %v174, 7
  %v176 = vsub.s32 0, %v175
  %v177 = vrot.slane %v172, %v176
  %vm179 = vcmask 818176
  %v181 = vsel %vm179, %v158, 0
  %v184 = vsel %vm84, %v171, 0
  %186 = vmatprep.subr.mxu0 0.0
  %187 = vmatpush1.msra.mxu0 %v159
  %188 = vmatprep.subr.mxu0 0.0
  %189 = vmatpush1.msra.mxu0 %v160
  %190 = vmatprep.subr.mxu0 0.0
  %191 = vmatpush1.msra.mxu0 %v161
  %192 = vmatprep.subr.mxu0 0.0
  %193 = vmatpush1.msra.mxu0 %v162
  %194 = vmatprep.subr.mxu0 0.0
  %195 = vmatpush1.msra.mxu0 %v163
  %196 = vmatprep.subr.mxu0 0.0
  %197 = vmatpush1.msra.mxu0 %v164
  %198 = vmatprep.subr.mxu0 0.0
  %199 = vmatpush1.msra.mxu0 %v165
  %200 = vmatprep.subr.mxu0 0.0
  %201 = vmatpush1.msra.mxu0 %v166
  %202 = vmatprep.subr.mxu0 0.0
  %203 = vmatpush1.msra.mxu0 %v167
  %204 = vmatprep.subr.mxu0 0.0
  %205 = vmatpush1.msra.mxu0 %v168
  %206 = vmatprep.subr.mxu0 0.0
  %207 = vmatpush1.msra.mxu0 %v169
  %208 = vmatprep.subr.mxu0 0.0
  %209 = vmatpush1.msra.mxu0 %v170
  %210 = vmatprep.subr.mxu0 0.0
  %211 = vmatpush1.msra.mxu0 %v184
  %212 = vmatprep.subr.mxu0 0.0
  %213 = vmatpush1.msra.mxu0 0.0
  %214 = vmatprep.subr.mxu0 0.0
  %215 = vmatpush1.msra.mxu0 0.0
  %216 = vmatprep.subr.mxu0 0.0
  %217 = vmatpush1.msra.mxu0 0.0
  %218 = vmatprep.subr.mxu0 0.0
  %219 = vmatpush1.msra.mxu0 0.0
  %220 = vmatprep.subr.mxu0 0.0
  %221 = vmatpush1.msra.mxu0 0.0
  %222 = vmatprep.subr.mxu0 0.0
  %223 = vmatpush1.msra.mxu0 0.0
  %224 = vmatprep.subr.mxu0 0.0
  %225 = vmatpush1.msra.mxu0 0.0
  %226 = vmatprep.subr.mxu0 0.0
  %227 = vmatpush1.msra.mxu0 0.0
  %228 = vmatprep.subr.mxu0 0.0
  %229 = vmatpush1.msra.mxu0 0.0
  %230 = vmatprep.subr.mxu0 0.0
  %231 = vmatpush1.msra.mxu0 0.0
  %232 = vmatprep.subr.mxu0 0.0
  %233 = vmatpush1.msra.mxu0 0.0
  %234 = vmatprep.subr.mxu0 0.0
  %235 = vmatpush1.msra.mxu0 0.0
  %236 = vmatprep.subr.mxu0 0.0
  %237 = vmatpush1.msra.mxu0 0.0
  %238 = vmatprep.subr.mxu0 0.0
  %239 = vmatpush1.msra.mxu0 0.0
  %240 = vmatprep.subr.mxu0 0.0
  %241 = vmatpush1.msra.mxu0 0.0
  %242 = vmatprep.subr.mxu0 0.0
  %243 = vmatpush1.msra.mxu0 0.0
  %244 = vmatprep.subr.mxu0 0.0
  %245 = vmatpush1.msra.mxu0 0.0
  %246 = vmatprep.subr.mxu0 0.0
  %247 = vmatpush1.msra.mxu0 0.0
  %248 = vmatprep.subr.mxu0 0.0
  %249 = vmatpush1.msra.mxu0 0.0
  %250 = vmatprep.mubr.f32.mxu0 0.0
  %251 = vmatmul.mubr.f32.gmra.mrb[0].mxu0 %v181
  %v252 = vpop.f32.mrb[0].mxu0
  %v253 = vadd.f32 %v177, %v252
  %v254 = vpop.f32.mrb[0].mxu0
  %255 = vdwg.mxu0
  %v256 = vmax.f32 %v253, 0.0
  %v257 = vld [vmem:[%s19] sm:$0x1]
  %v259 = vlaneseq
  %v260 = vshrl.u32 %v259, 7
  %v261 = vsub.s32 0, %v260
  %v262 = vrot.slane %v257, %v261
  %v264 = vmul.f32 %v256, %v262
  %vm265 = vcmask 672768
  %v266 = vsel %vm265, %v264, 0.0
  %267 = vadd.xlane.f32.xlu0 %v266
  %v268 = vpop.xlane.xlu0 %267
  %v269 = vld [vmem:[#allocation4] sm:$0x1]
  %v271 = vlaneseq
  %v272 = vshrl.u32 %v271, 7
  %v273 = vsub.s32 0, %v272
  %v274 = vrot.slane %v269, %v273
  %v276 = vadd.f32 %v268, %v274
  %v277 = vld [vmem:[%s0] sm:$0xff]
  %v278 = vld [vmem:[%s0 + $0x8] sm:$0xff]
  %v279 = vld [vmem:[%s0 + $0x10] sm:$0xf]
  %v280 = vld [vmem:[%s6] sm:$0xff]
  %v281 = vld [vmem:[%s6 + $0x8] sm:$0xff]
  %v282 = vld [vmem:[%s6 + $0x10] sm:$0xff]
  %v283 = vld [vmem:[%s6 + $0x18] sm:$0xff]
  %v284 = vld [vmem:[%s6 + $0x20] sm:$0xff]
  %v285 = vld [vmem:[%s6 + $0x28] sm:$0xff]
  %v286 = vld [vmem:[%s6 + $0x30] sm:$0xff]
  %v287 = vld [vmem:[%s6 + $0x38] sm:$0xff]
  %v288 = vld [vmem:[%s6 + $0x40] sm:$0xf]
  %v289 = vld [vmem:[%s7] sm:$0x1]
  %v291 = vlaneseq
  %v292 = vshrl.u32 %v291, 7
  %v293 = vsub.s32 0, %v292
  %v294 = vrot.slane %v289, %v293
  %vm296 = vcmask 556032
  %v298 = vsel %vm296, %v277, 0
  %v301 = vsel %vm296, %v278, 0
  %v304 = vsel %vm296, %v279, 0
  %v307 = vsel %vm84, %v288, 0
  %309 = vmatprep.subr.mxu0 0.0
  %310 = vmatpush1.msra.mxu0 %v280
  %311 = vmatprep.subr.mxu0 0.0
  %312 = vmatpush1.msra.mxu0 %v281
  %313 = vmatprep.subr.mxu0 0.0
  %314 = vmatpush1.msra.mxu0 %v282
  %315 = vmatprep.subr.mxu0 0.0
  %316 = vmatpush1.msra.mxu0 %v283
  %317 = vmatprep.subr.mxu0 0.0
  %318 = vmatpush1.msra.mxu0 %v284
  %319 = vmatprep.subr.mxu0 0.0
  %320 = vmatpush1.msra.mxu0 %v285
  %321 = vmatprep.subr.mxu0 0.0
  %322 = vmatpush1.msra.mxu0 %v286
  %323 = vmatprep.subr.mxu0 0.0
  %324 = vmatpush1.msra.mxu0 %v287
  %325 = vmatprep.subr.mxu0 0.0
  %326 = vmatpush1.msra.mxu0 %v307
  %327 = vmatprep.subr.mxu0 0.0
  %328 = vmatpush1.msra.mxu0 0.0
  %329 = vmatprep.subr.mxu0 0.0
  %330 = vmatpush1.msra.mxu0 0.0
  %331 = vmatprep.subr.mxu0 0.0
  %332 = vmatpush1.msra.mxu0 0.0
  %333 = vmatprep.subr.mxu0 0.0
  %334 = vmatpush1.msra.mxu0 0.0
  %335 = vmatprep.subr.mxu0 0.0
  %336 = vmatpush1.msra.mxu0 0.0
  %337 = vmatprep.subr.mxu0 0.0
  %338 = vmatpush1.msra.mxu0 0.0
  %339 = vmatprep.subr.mxu0 0.0
  %340 = vmatpush1.msra.mxu0 0.0
  %341 = vmatprep.subr.mxu0 0.0
  %342 = vmatpush1.msra.mxu0 0.0
  %343 = vmatprep.subr.mxu0 0.0
  %344 = vmatpush1.msra.mxu0 0.0
  %345 = vmatprep.subr.mxu0 0.0
  %346 = vmatpush1.msra.mxu0 0.0
  %347 = vmatprep.subr.mxu0 0.0
  %348 = vmatpush1.msra.mxu0 0.0
  %349 = vmatprep.subr.mxu0 0.0
  %350 = vmatpush1.msra.mxu0 0.0
  %351 = vmatprep.subr.mxu0 0.0
  %352 = vmatpush1.msra.mxu0 0.0
  %353 = vmatprep.subr.mxu0 0.0
  %354 = vmatpush1.msra.mxu0 0.0
  %355 = vmatprep.subr.mxu0 0.0
  %356 = vmatpush1.msra.mxu0 0.0
  %357 = vmatprep.subr.mxu0 0.0
  %358 = vmatpush1.msra.mxu0 0.0
  %359 = vmatprep.subr.mxu0 0.0
  %360 = vmatpush1.msra.mxu0 0.0
  %361 = vmatprep.subr.mxu0 0.0
  %362 = vmatpush1.msra.mxu0 0.0
  %363 = vmatprep.subr.mxu0 0.0
  %364 = vmatpush1.msra.mxu0 0.0
  %365 = vmatprep.subr.mxu0 0.0
  %366 = vmatpush1.msra.mxu0 0.0
  %367 = vmatprep.subr.mxu0 0.0
  %368 = vmatpush1.msra.mxu0 0.0
  %369 = vmatprep.subr.mxu0 0.0
  %370 = vmatpush1.msra.mxu0 0.0
  %371 = vmatprep.subr.mxu0 0.0
  %372 = vmatpush1.msra.mxu0 0.0
  %373 = vmatprep.mubr.f32.mxu0 0.0
  %374 = vmatmul.mubr.f32.gmra.mrb[0].mxu0 %v298
  %v375 = vpop.f32.mrb[0].mxu0
  %v376 = vadd.f32 %v294, %v375
  %v377 = vpop.f32.mrb[0].mxu0
  %378 = vmatprep.mubr.f32.mxu0 0.0
  %379 = vmatmul.mubr.f32.gmra.mrb[0].mxu0 %v301
  %v380 = vpop.f32.mrb[0].mxu0
  %v381 = vadd.f32 %v294, %v380
  %v382 = vpop.f32.mrb[0].mxu0
  %383 = vmatprep.mubr.f32.mxu0 0.0
  %384 = vmatmul.mubr.f32.gmra.mrb[0].mxu0 %v304
  %v385 = vpop.f32.mrb[0].mxu0
  %v386 = vadd.f32 %v294, %v385
  %v387 = vpop.f32.mrb[0].mxu0
  %388 = vdwg.mxu0
  %v389 = vmax.f32 %v376, 0.0
  %v390 = vmax.f32 %v381, 0.0
  %v391 = vmax.f32 %v386, 0.0
  %v392 = vld [vmem:[%s8] sm:$0xff]
  %v393 = vld [vmem:[%s8 + $0x8] sm:$0xff]
  %v394 = vld [vmem:[%s8 + $0x10] sm:$0xff]
  %v395 = vld [vmem:[%s8 + $0x18] sm:$0xff]
  %v396 = vld [vmem:[%s8 + $0x20] sm:$0xff]
  %v397 = vld [vmem:[%s8 + $0x28] sm:$0xff]
  %v398 = vld [vmem:[%s8 + $0x30] sm:$0x3]
  %v399 = vld [vmem:[%s9] sm:$0xff]
  %v400 = vld [vmem:[%s9 + $0x8] sm:$0xff]
  %v401 = vld [vmem:[%s9 + $0x10] sm:$0xff]
  %v402 = vld [vmem:[%s9 + $0x18] sm:$0xff]
  %v403 = vld [vmem:[%s9 + $0x20] sm:$0xff]
  %v404 = vld [vmem:[%s9 + $0x28] sm:$0xff]
  %v405 = vld [vmem:[%s9 + $0x30] sm:$0x3]
  %vm408 = vcmask 1045504
  %v409 = vrot.slane %v390, 2
  %v410 = vrot.slane %v391, 2
  %v411 = vsel %vm408, %v409, %v410
  %vm412 = vcmask 408576
  %v413 = vsel %vm412, %v411, 0
  %v415 = vsel %vm412, %v410, 0
  %vm417 = vcmask 1041408
  %v419 = vsel %vm417, %v405, 0
  %421 = vmatprep.subr.mxu0 0.0
  %422 = vmatpush1.msra.mxu0 %v399
  %423 = vmatprep.subr.mxu0 0.0
  %424 = vmatpush1.msra.mxu0 %v400
  %425 = vmatprep.subr.mxu0 0.0
  %426 = vmatpush1.msra.mxu0 %v401
  %427 = vmatprep.subr.mxu0 0.0
  %428 = vmatpush1.msra.mxu0 %v402
  %429 = vmatprep.subr.mxu0 0.0
  %430 = vmatpush1.msra.mxu0 %v403
  %431 = vmatprep.subr.mxu0 0.0
  %432 = vmatpush1.msra.mxu0 %v404
  %433 = vmatprep.subr.mxu0 0.0
  %434 = vmatpush1.msra.mxu0 %v419
  %435 = vmatprep.subr.mxu0 0.0
  %436 = vmatpush1.msra.mxu0 0.0
  %437 = vmatprep.subr.mxu0 0.0
  %438 = vmatpush1.msra.mxu0 0.0
  %439 = vmatprep.subr.mxu0 0.0
  %440 = vmatpush1.msra.mxu0 0.0
  %441 = vmatprep.subr.mxu0 0.0
  %442 = vmatpush1.msra.mxu0 0.0
  %443 = vmatprep.subr.mxu0 0.0
  %444 = vmatpush1.msra.mxu0 0.0
  %445 = vmatprep.subr.mxu0 0.0
  %446 = vmatpush1.msra.mxu0 0.0
  %447 = vmatprep.subr.mxu0 0.0
  %448 = vmatpush1.msra.mxu0 0.0
  %449 = vmatprep.subr.mxu0 0.0
  %450 = vmatpush1.msra.mxu0 0.0
  %451 = vmatprep.subr.mxu0 0.0
  %452 = vmatpush1.msra.mxu0 0.0
  %453 = vmatprep.subr.mxu0 0.0
  %454 = vmatpush1.msra.mxu0 0.0
  %455 = vmatprep.subr.mxu0 0.0
  %456 = vmatpush1.msra.mxu0 0.0
  %457 = vmatprep.subr.mxu0 0.0
  %458 = vmatpush1.msra.mxu0 0.0
  %459 = vmatprep.subr.mxu0 0.0
  %460 = vmatpush1.msra.mxu0 0.0
  %461 = vmatprep.subr.mxu0 0.0
  %462 = vmatpush1.msra.mxu0 0.0
  %463 = vmatprep.subr.mxu0 0.0
  %464 = vmatpush1.msra.mxu0 0.0
  %465 = vmatprep.subr.mxu0 0.0
  %466 = vmatpush1.msra.mxu0 0.0
  %467 = vmatprep.subr.mxu0 0.0
  %468 = vmatpush1.msra.mxu0 0.0
  %469 = vmatprep.subr.mxu0 0.0
  %470 = vmatpush1.msra.mxu0 0.0
  %471 = vmatprep.subr.mxu0 0.0
  %472 = vmatpush1.msra.mxu0 0.0
  %473 = vmatprep.subr.mxu0 0.0
  %474 = vmatpush1.msra.mxu0 0.0
  %475 = vmatprep.subr.mxu0 0.0
  %476 = vmatpush1.msra.mxu0 0.0
  %477 = vmatprep.subr.mxu0 0.0
  %478 = vmatpush1.msra.mxu0 0.0
  %479 = vmatprep.subr.mxu0 0.0
  %480 = vmatpush1.msra.mxu0 0.0
  %481 = vmatprep.subr.mxu0 0.0
  %482 = vmatpush1.msra.mxu0 0.0
  %483 = vmatprep.subr.mxu0 0.0
  %484 = vmatpush1.msra.mxu0 0.0
  %485 = vmatprep.mubr.f32.mxu0 0.0
  %486 = vmatmul.mubr.f32.gmra.mrb[0].mxu0 %v413
  %v487 = vpop.f32.mrb[0].mxu0
  %v488 = vadd.f32 0.0, %v487
  %v489 = vpop.f32.mrb[0].mxu0
  %490 = vmatprep.mubr.f32.mxu0 0.0
  %491 = vmatmul.mubr.f32.gmra.mrb[0].mxu0 %v415
  %v492 = vpop.f32.mrb[0].mxu0
  %v493 = vadd.f32 0.0, %v492
  %v494 = vpop.f32.mrb[0].mxu0
  %495 = vdwg.mxu0
  %v497 = vsel %vm412, %v389, 0
  %v499 = vsel %vm412, %v390, 0
  %v502 = vsel %vm417, %v398, 0
  %504 = vmatprep.subr.mxu0 0.0
  %505 = vmatpush1.msra.mxu0 %v392
  %506 = vmatprep.subr.mxu0 0.0
  %507 = vmatpush1.msra.mxu0 %v393
  %508 = vmatprep.subr.mxu0 0.0
  %509 = vmatpush1.msra.mxu0 %v394
  %510 = vmatprep.subr.mxu0 0.0
  %511 = vmatpush1.msra.mxu0 %v395
  %512 = vmatprep.subr.mxu0 0.0
  %513 = vmatpush1.msra.mxu0 %v396
  %514 = vmatprep.subr.mxu0 0.0
  %515 = vmatpush1.msra.mxu0 %v397
  %516 = vmatprep.subr.mxu0 0.0
  %517 = vmatpush1.msra.mxu0 %v502
  %518 = vmatprep.subr.mxu0 0.0
  %519 = vmatpush1.msra.mxu0 0.0
  %520 = vmatprep.subr.mxu0 0.0
  %521 = vmatpush1.msra.mxu0 0.0
  %522 = vmatprep.subr.mxu0 0.0
  %523 = vmatpush1.msra.mxu0 0.0
  %524 = vmatprep.subr.mxu0 0.0
  %525 = vmatpush1.msra.mxu0 0.0
  %526 = vmatprep.subr.mxu0 0.0
  %527 = vmatpush1.msra.mxu0 0.0
  %528 = vmatprep.subr.mxu0 0.0
  %529 = vmatpush1.msra.mxu0 0.0
  %530 = vmatprep.subr.mxu0 0.0
  %531 = vmatpush1.msra.mxu0 0.0
  %532 = vmatprep.subr.mxu0 0.0
  %533 = vmatpush1.msra.mxu0 0.0
  %534 = vmatprep.subr.mxu0 0.0
  %535 = vmatpush1.msra.mxu0 0.0
  %536 = vmatprep.subr.mxu0 0.0
  %537 = vmatpush1.msra.mxu0 0.0
  %538 = vmatprep.subr.mxu0 0.0
  %539 = vmatpush1.msra.mxu0 0.0
  %540 = vmatprep.subr.mxu0 0.0
  %541 = vmatpush1.msra.mxu0 0.0
  %542 = vmatprep.subr.mxu0 0.0
  %543 = vmatpush1.msra.mxu0 0.0
  %544 = vmatprep.subr.mxu0 0.0
  %545 = vmatpush1.msra.mxu0 0.0
  %546 = vmatprep.subr.mxu0 0.0
  %547 = vmatpush1.msra.mxu0 0.0
  %548 = vmatprep.subr.mxu0 0.0
  %549 = vmatpush1.msra.mxu0 0.0
  %550 = vmatprep.subr.mxu0 0.0
  %551 = vmatpush1.msra.mxu0 0.0
  %552 = vmatprep.subr.mxu0 0.0
  %553 = vmatpush1.msra.mxu0 0.0
  %554 = vmatprep.subr.mxu0 0.0
  %555 = vmatpush1.msra.mxu0 0.0
  %556 = vmatprep.subr.mxu0 0.0
  %557 = vmatpush1.msra.mxu0 0.0
  %558 = vmatprep.subr.mxu0 0.0
  %559 = vmatpush1.msra.mxu0 0.0
  %560 = vmatprep.subr.mxu0 0.0
  %561 = vmatpush1.msra.mxu0 0.0
  %562 = vmatprep.subr.mxu0 0.0
  %563 = vmatpush1.msra.mxu0 0.0
  %564 = vmatprep.subr.mxu0 0.0
  %565 = vmatpush1.msra.mxu0 0.0
  %566 = vmatprep.subr.mxu0 0.0
  %567 = vmatpush1.msra.mxu0 0.0
  %568 = vmatprep.mubr.f32.mxu0 0.0
  %569 = vmatmul.mubr.f32.gmra.mrb[0].mxu0 %v497
  %v570 = vpop.f32.mrb[0].mxu0
  %v571 = vadd.f32 %v488, %v570
  %v572 = vpop.f32.mrb[0].mxu0
  %573 = vmatprep.mubr.f32.mxu0 0.0
  %574 = vmatmul.mubr.f32.gmra.mrb[0].mxu0 %v499
  %v575 = vpop.f32.mrb[0].mxu0
  %v576 = vadd.f32 %v493, %v575
  %v577 = vpop.f32.mrb[0].mxu0
  %578 = vdwg.mxu0
  %v579 = vld [vmem:[%s10] sm:$0x1]
  %v581 = vlaneseq
  %v582 = vshrl.u32 %v581, 7
  %v583 = vsub.s32 0, %v582
  %v584 = vrot.slane %v579, %v583
  %v586 = vadd.f32 %v571, %v584
  %v587 = vadd.f32 %v576, %v584
  %v588 = vld [vmem:[%s11] sm:$0xff]
  %v589 = vld [vmem:[%s11 + $0x8] sm:$0xff]
  %v590 = vld [vmem:[%s11 + $0x10] sm:$0xff]
  %v591 = vld [vmem:[%s11 + $0x18] sm:$0xff]
  %v592 = vld [vmem:[%s12] sm:$0x1]
  %v594 = vlaneseq
  %v595 = vshrl.u32 %v594, 7
  %v596 = vsub.s32 0, %v595
  %v597 = vrot.slane %v592, %v596
  %vm599 = vcmask 261120
  %v601 = vsel %vm599, 0.0, 0
  %603 = vmatprep.subr.mxu0 0.0
  %604 = vmatpush1.msra.mxu0 %v588
  %605 = vmatprep.subr.mxu0 0.0
  %606 = vmatpush1.msra.mxu0 %v589
  %607 = vmatprep.subr.mxu0 0.0
  %608 = vmatpush1.msra.mxu0 %v590
  %609 = vmatprep.subr.mxu0 0.0
  %610 = vmatpush1.msra.mxu0 %v591
  %611 = vmatprep.subr.mxu0 0.0
  %612 = vmatpush1.msra.mxu0 0.0
  %613 = vmatprep.subr.mxu0 0.0
  %614 = vmatpush1.msra.mxu0 0.0
  %615 = vmatprep.subr.mxu0 0.0
  %616 = vmatpush1.msra.mxu0 0.0
  %617 = vmatprep.subr.mxu0 0.0
  %618 = vmatpush1.msra.mxu0 0.0
  %619 = vmatprep.subr.mxu0 0.0
  %620 = vmatpush1.msra.mxu0 0.0
  %621 = vmatprep.subr.mxu0 0.0
  %622 = vmatpush1.msra.mxu0 0.0
  %623 = vmatprep.subr.mxu0 0.0
  %624 = vmatpush1.msra.mxu0 0.0
  %625 = vmatprep.subr.mxu0 0.0
  %626 = vmatpush1.msra.mxu0 0.0
  %627 = vmatprep.subr.mxu0 0.0
  %628 = vmatpush1.msra.mxu0 0.0
  %629 = vmatprep.subr.mxu0 0.0
  %630 = vmatpush1.msra.mxu0 0.0
  %631 = vmatprep.subr.mxu0 0.0
  %632 = vmatpush1.msra.mxu0 0.0
  %633 = vmatprep.subr.mxu0 0.0
  %634 = vmatpush1.msra.mxu0 0.0
  %635 = vmatprep.subr.mxu0 0.0
  %636 = vmatpush1.msra.mxu0 0.0
  %637 = vmatprep.subr.mxu0 0.0
  %638 = vmatpush1.msra.mxu0 0.0
  %639 = vmatprep.subr.mxu0 0.0
  %640 = vmatpush1.msra.mxu0 0.0
  %641 = vmatprep.subr.mxu0 0.0
  %642 = vmatpush1.msra.mxu0 0.0
  %643 = vmatprep.subr.mxu0 0.0
  %644 = vmatpush1.msra.mxu0 0.0
  %645 = vmatprep.subr.mxu0 0.0
  %646 = vmatpush1.msra.mxu0 0.0
  %647 = vmatprep.subr.mxu0 0.0
  %648 = vmatpush1.msra.mxu0 0.0
  %649 = vmatprep.subr.mxu0 0.0
  %650 = vmatpush1.msra.mxu0 0.0
  %651 = vmatprep.subr.mxu0 0.0
  %652 = vmatpush1.msra.mxu0 0.0
  %653 = vmatprep.subr.mxu0 0.0
  %654 = vmatpush1.msra.mxu0 0.0
  %655 = vmatprep.subr.mxu0 0.0
  %656 = vmatpush1.msra.mxu0 0.0
  %657 = vmatprep.subr.mxu0 0.0
  %658 = vmatpush1.msra.mxu0 0.0
  %659 = vmatprep.subr.mxu0 0.0
  %660 = vmatpush1.msra.mxu0 0.0
  %661 = vmatprep.subr.mxu0 0.0
  %662 = vmatpush1.msra.mxu0 0.0
  %663 = vmatprep.subr.mxu0 0.0
  %664 = vmatpush1.msra.mxu0 0.0
  %665 = vmatprep.subr.mxu0 0.0
  %666 = vmatpush1.msra.mxu0 0.0
  %667 = vmatprep.mubr.f32.mxu0 0.0
  %668 = vmatmul.mubr.f32.gmra.mrb[0].mxu0 %v601
  %v669 = vpop.f32.mrb[0].mxu0
  %v670 = vadd.f32 %v597, %v669
  %v671 = vpop.f32.mrb[0].mxu0
  %672 = vdwg.mxu0
  %v673 = vadd.f32 %v586, %v670
  %v674 = vxor.u32 %v673, 2147483648
  %v675 = vmul.f32 %v674, 1.442695
  %v676 = vpow.pop %v675
  %v677 = vadd.f32 %v676, 1.0
  %v678 = vrcp.pop %v677
  %v679 = vmul.f32 1.0, %v678
  %681 = vrot.lane.b32.xlu0 %v670, 64
  %v682 = vpop.permute.xlu0 %681
  %v684 = vmul.f32 %v679, %v682
  %686 = vrot.lane.b32.xlu0 %v684, 64
  %v687 = vpop.permute.xlu0 %686
  %v689 = vadd.f32 %v586, %v687
  %v690 = vtanh.pop %v689
  %v691 = vsub.f32 1.0, %v679
  %693 = vrot.lane.b32.xlu0 %v690, 96
  %v694 = vpop.permute.xlu0 %693
  %v696 = vmul.f32 %v691, %v694
  %v697 = vmul.f32 %v679, 0.0
  %v698 = vadd.f32 %v696, %v697
  %700 = vrot.lane.b32.xlu0 %v698, 96
  %v701 = vpop.permute.xlu0 %700
  %vm703 = vcmask 254976
  %704 = vst.msk [vmem:[#allocation2] sm:$0x3] %vm703, %v701
  %705 = vst.msk [vmem:[#allocation3 + $0x8] sm:$0x3] %vm703, %v701
  %v706 = vsel %vm599, %v701, 0
  %708 = vmatprep.subr.mxu0 0.0
  %709 = vmatpush1.msra.mxu0 %v588
  %710 = vmatprep.subr.mxu0 0.0
  %711 = vmatpush1.msra.mxu0 %v589
  %712 = vmatprep.subr.mxu0 0.0
  %713 = vmatpush1.msra.mxu0 %v590
  %714 = vmatprep.subr.mxu0 0.0
  %715 = vmatpush1.msra.mxu0 %v591
  %716 = vmatprep.subr.mxu0 0.0
  %717 = vmatpush1.msra.mxu0 0.0
  %718 = vmatprep.subr.mxu0 0.0
  %719 = vmatpush1.msra.mxu0 0.0
  %720 = vmatprep.subr.mxu0 0.0
  %721 = vmatpush1.msra.mxu0 0.0
  %722 = vmatprep.subr.mxu0 0.0
  %723 = vmatpush1.msra.mxu0 0.0
  %724 = vmatprep.subr.mxu0 0.0
  %725 = vmatpush1.msra.mxu0 0.0
  %726 = vmatprep.subr.mxu0 0.0
  %727 = vmatpush1.msra.mxu0 0.0
  %728 = vmatprep.subr.mxu0 0.0
  %729 = vmatpush1.msra.mxu0 0.0
  %730 = vmatprep.subr.mxu0 0.0
  %731 = vmatpush1.msra.mxu0 0.0
  %732 = vmatprep.subr.mxu0 0.0
  %733 = vmatpush1.msra.mxu0 0.0
  %734 = vmatprep.subr.mxu0 0.0
  %735 = vmatpush1.msra.mxu0 0.0
  %736 = vmatprep.subr.mxu0 0.0
  %737 = vmatpush1.msra.mxu0 0.0
  %738 = vmatprep.subr.mxu0 0.0
  %739 = vmatpush1.msra.mxu0 0.0
  %740 = vmatprep.subr.mxu0 0.0
  %741 = vmatpush1.msra.mxu0 0.0
  %742 = vmatprep.subr.mxu0 0.0
  %743 = vmatpush1.msra.mxu0 0.0
  %744 = vmatprep.subr.mxu0 0.0
  %745 = vmatpush1.msra.mxu0 0.0
  %746 = vmatprep.subr.mxu0 0.0
  %747 = vmatpush1.msra.mxu0 0.0
  %748 = vmatprep.subr.mxu0 0.0
  %749 = vmatpush1.msra.mxu0 0.0
  %750 = vmatprep.subr.mxu0 0.0
  %751 = vmatpush1.msra.mxu0 0.0
  %752 = vmatprep.subr.mxu0 0.0
  %753 = vmatpush1.msra.mxu0 0.0
  %754 = vmatprep.subr.mxu0 0.0
  %755 = vmatpush1.msra.mxu0 0.0
  %756 = vmatprep.subr.mxu0 0.0
  %757 = vmatpush1.msra.mxu0 0.0
  %758 = vmatprep.subr.mxu0 0.0
  %759 = vmatpush1.msra.mxu0 0.0
  %760 = vmatprep.subr.mxu0 0.0
  %761 = vmatpush1.msra.mxu0 0.0
  %762 = vmatprep.subr.mxu0 0.0
  %763 = vmatpush1.msra.mxu0 0.0
  %764 = vmatprep.subr.mxu0 0.0
  %765 = vmatpush1.msra.mxu0 0.0
  %766 = vmatprep.subr.mxu0 0.0
  %767 = vmatpush1.msra.mxu0 0.0
  %768 = vmatprep.subr.mxu0 0.0
  %769 = vmatpush1.msra.mxu0 0.0
  %770 = vmatprep.subr.mxu0 0.0
  %771 = vmatpush1.msra.mxu0 0.0
  %772 = vmatprep.mubr.f32.mxu0 0.0
  %773 = vmatmul.mubr.f32.gmra.mrb[0].mxu0 %v706
  %v774 = vpop.f32.mrb[0].mxu0
  %v775 = vadd.f32 %v597, %v774
  %v776 = vpop.f32.mrb[0].mxu0
  %777 = vdwg.mxu0
  %v779 = vrot.slane %v775, 6
  %v781 = vadd.f32 %v586, %v779
  %v782 = vxor.u32 %v781, 2147483648
  %v783 = vmul.f32 %v782, 1.442695
  %v784 = vpow.pop %v783
  %v785 = vadd.f32 %v784, 1.0
  %v786 = vrcp.pop %v785
  %v787 = vmul.f32 1.0, %v786
  %788 = vrot.lane.b32.xlu0 %v779, 64
  %v789 = vpop.permute.xlu0 %788
  %v791 = vmul.f32 %v787, %v789
  %793 = vrot.lane.b32.xlu0 %v791, 64
  %v794 = vpop.permute.xlu0 %793
  %v796 = vadd.f32 %v586, %v794
  %v797 = vtanh.pop %v796
  %v798 = vsub.f32 1.0, %v787
  %800 = vrot.lane.b32.xlu0 %v797, 96
  %v801 = vpop.permute.xlu0 %800
  %v803 = vmul.f32 %v798, %v801
  %v804 = vrot.slane %v698, 6
  %v806 = vmul.f32 %v787, %v804
  %v807 = vadd.f32 %v803, %v806
  %809 = vrot.lane.b32.xlu0 %v807, 96
  %v810 = vpop.permute.xlu0 %809
  %vm812 = vcmask 257026
  %813 = vst.msk [vmem:[#allocation2] sm:$0xc] %vm812, %v810
  %814 = vst.msk [vmem:[#allocation3 + $0x4] sm:$0xc] %vm812, %v810
  %v815 = vrot.slane %v807, 2
  %816 = vrot.lane.b32.xlu0 %v815, 96
  %v817 = vpop.permute.xlu0 %816
  %v818 = vsel %vm599, %v817, 0
  %820 = vmatprep.subr.mxu0 0.0
  %821 = vmatpush1.msra.mxu0 %v588
  %822 = vmatprep.subr.mxu0 0.0
  %823 = vmatpush1.msra.mxu0 %v589
  %824 = vmatprep.subr.mxu0 0.0
  %825 = vmatpush1.msra.mxu0 %v590
  %826 = vmatprep.subr.mxu0 0.0
  %827 = vmatpush1.msra.mxu0 %v591
  %828 = vmatprep.subr.mxu0 0.0
  %829 = vmatpush1.msra.mxu0 0.0
  %830 = vmatprep.subr.mxu0 0.0
  %831 = vmatpush1.msra.mxu0 0.0
  %832 = vmatprep.subr.mxu0 0.0
  %833 = vmatpush1.msra.mxu0 0.0
  %834 = vmatprep.subr.mxu0 0.0
  %835 = vmatpush1.msra.mxu0 0.0
  %836 = vmatprep.subr.mxu0 0.0
  %837 = vmatpush1.msra.mxu0 0.0
  %838 = vmatprep.subr.mxu0 0.0
  %839 = vmatpush1.msra.mxu0 0.0
  %840 = vmatprep.subr.mxu0 0.0
  %841 = vmatpush1.msra.mxu0 0.0
  %842 = vmatprep.subr.mxu0 0.0
  %843 = vmatpush1.msra.mxu0 0.0
  %844 = vmatprep.subr.mxu0 0.0
  %845 = vmatpush1.msra.mxu0 0.0
  %846 = vmatprep.subr.mxu0 0.0
  %847 = vmatpush1.msra.mxu0 0.0
  %848 = vmatprep.subr.mxu0 0.0
  %849 = vmatpush1.msra.mxu0 0.0
  %850 = vmatprep.subr.mxu0 0.0
  %851 = vmatpush1.msra.mxu0 0.0
  %852 = vmatprep.subr.mxu0 0.0
  %853 = vmatpush1.msra.mxu0 0.0
  %854 = vmatprep.subr.mxu0 0.0
  %855 = vmatpush1.msra.mxu0 0.0
  %856 = vmatprep.subr.mxu0 0.0
  %857 = vmatpush1.msra.mxu0 0.0
  %858 = vmatprep.subr.mxu0 0.0
  %859 = vmatpush1.msra.mxu0 0.0
  %860 = vmatprep.subr.mxu0 0.0
  %861 = vmatpush1.msra.mxu0 0.0
  %862 = vmatprep.subr.mxu0 0.0
  %863 = vmatpush1.msra.mxu0 0.0
  %864 = vmatprep.subr.mxu0 0.0
  %865 = vmatpush1.msra.mxu0 0.0
  %866 = vmatprep.subr.mxu0 0.0
  %867 = vmatpush1.msra.mxu0 0.0
  %868 = vmatprep.subr.mxu0 0.0
  %869 = vmatpush1.msra.mxu0 0.0
  %870 = vmatprep.subr.mxu0 0.0
  %871 = vmatpush1.msra.mxu0 0.0
  %872 = vmatprep.subr.mxu0 0.0
  %873 = vmatpush1.msra.mxu0 0.0
  %874 = vmatprep.subr.mxu0 0.0
  %875 = vmatpush1.msra.mxu0 0.0
  %876 = vmatprep.subr.mxu0 0.0
  %877 = vmatpush1.msra.mxu0 0.0
  %878 = vmatprep.subr.mxu0 0.0
  %879 = vmatpush1.msra.mxu0 0.0
  %880 = vmatprep.subr.mxu0 0.0
  %881 = vmatpush1.msra.mxu0 0.0
  %882 = vmatprep.subr.mxu0 0.0
  %883 = vmatpush1.msra.mxu0 0.0
  %884 = vmatprep.mubr.f32.mxu0 0.0
  %885 = vmatmul.mubr.f32.gmra.mrb[0].mxu0 %v818
  %v886 = vpop.f32.mrb[0].mxu0
  %v887 = vadd.f32 %v597, %v886
  %v888 = vpop.f32.mrb[0].mxu0
  %889 = vdwg.mxu0
  %v891 = vrot.slane %v887, 4
  %v893 = vadd.f32 %v586, %v891
  %v894 = vxor.u32 %v893, 2147483648
  %v895 = vmul.f32 %v894, 1.442695
  %v896 = vpow.pop %v895
  %v897 = vadd.f32 %v896, 1.0
  %v898 = vrcp.pop %v897
  %v899 = vmul.f32 1.0, %v898
  %900 = vrot.lane.b32.xlu0 %v891, 64
  %v901 = vpop.permute.xlu0 %900
  %v903 = vmul.f32 %v899, %v901
  %905 = vrot.lane.b32.xlu0 %v903, 64
  %v906 = vpop.permute.xlu0 %905
  %v908 = vadd.f32 %v586, %v906
  %v909 = vtanh.pop %v908
  %v910 = vsub.f32 1.0, %v899
  %912 = vrot.lane.b32.xlu0 %v909, 96
  %v913 = vpop.permute.xlu0 %912
  %v915 = vmul.f32 %v910, %v913
  %v916 = vrot.slane %v807, 6
  %v918 = vmul.f32 %v899, %v916
  %v919 = vadd.f32 %v915, %v918
  %921 = vrot.lane.b32.xlu0 %v919, 96
  %v922 = vpop.permute.xlu0 %921
  %vm924 = vcmask 259076
  %925 = vst.msk [vmem:[#allocation2] sm:$0x30] %vm924, %v922
  %926 = vst.msk [vmem:[#allocation3] sm:$0x30] %vm924, %v922
  %v927 = vrot.slane %v919, 4
  %928 = vrot.lane.b32.xlu0 %v927, 96
  %v929 = vpop.permute.xlu0 %928
  %v930 = vsel %vm599, %v929, 0
  %932 = vmatprep.subr.mxu0 0.0
  %933 = vmatpush1.msra.mxu0 %v588
  %934 = vmatprep.subr.mxu0 0.0
  %935 = vmatpush1.msra.mxu0 %v589
  %936 = vmatprep.subr.mxu0 0.0
  %937 = vmatpush1.msra.mxu0 %v590
  %938 = vmatprep.subr.mxu0 0.0
  %939 = vmatpush1.msra.mxu0 %v591
  %940 = vmatprep.subr.mxu0 0.0
  %941 = vmatpush1.msra.mxu0 0.0
  %942 = vmatprep.subr.mxu0 0.0
  %943 = vmatpush1.msra.mxu0 0.0
  %944 = vmatprep.subr.mxu0 0.0
  %945 = vmatpush1.msra.mxu0 0.0
  %946 = vmatprep.subr.mxu0 0.0
  %947 = vmatpush1.msra.mxu0 0.0
  %948 = vmatprep.subr.mxu0 0.0
  %949 = vmatpush1.msra.mxu0 0.0
  %950 = vmatprep.subr.mxu0 0.0
  %951 = vmatpush1.msra.mxu0 0.0
  %952 = vmatprep.subr.mxu0 0.0
  %953 = vmatpush1.msra.mxu0 0.0
  %954 = vmatprep.subr.mxu0 0.0
  %955 = vmatpush1.msra.mxu0 0.0
  %956 = vmatprep.subr.mxu0 0.0
  %957 = vmatpush1.msra.mxu0 0.0
  %958 = vmatprep.subr.mxu0 0.0
  %959 = vmatpush1.msra.mxu0 0.0
  %960 = vmatprep.subr.mxu0 0.0
  %961 = vmatpush1.msra.mxu0 0.0
  %962 = vmatprep.subr.mxu0 0.0
  %963 = vmatpush1.msra.mxu0 0.0
  %964 = vmatprep.subr.mxu0 0.0
  %965 = vmatpush1.msra.mxu0 0.0
  %966 = vmatprep.subr.mxu0 0.0
  %967 = vmatpush1.msra.mxu0 0.0
  %968 = vmatprep.subr.mxu0 0.0
  %969 = vmatpush1.msra.mxu0 0.0
  %970 = vmatprep.subr.mxu0 0.0
  %971 = vmatpush1.msra.mxu0 0.0
  %972 = vmatprep.subr.mxu0 0.0
  %973 = vmatpush1.msra.mxu0 0.0
  %974 = vmatprep.subr.mxu0 0.0
  %975 = vmatpush1.msra.mxu0 0.0
  %976 = vmatprep.subr.mxu0 0.0
  %977 = vmatpush1.msra.mxu0 0.0
  %978 = vmatprep.subr.mxu0 0.0
  %979 = vmatpush1.msra.mxu0 0.0
  %980 = vmatprep.subr.mxu0 0.0
  %981 = vmatpush1.msra.mxu0 0.0
  %982 = vmatprep.subr.mxu0 0.0
  %983 = vmatpush1.msra.mxu0 0.0
  %984 = vmatprep.subr.mxu0 0.0
  %985 = vmatpush1.msra.mxu0 0.0
  %986 = vmatprep.subr.mxu0 0.0
  %987 = vmatpush1.msra.mxu0 0.0
  %988 = vmatprep.subr.mxu0 0.0
  %989 = vmatpush1.msra.mxu0 0.0
  %990 = vmatprep.subr.mxu0 0.0
  %991 = vmatpush1.msra.mxu0 0.0
  %992 = vmatprep.subr.mxu0 0.0
  %993 = vmatpush1.msra.mxu0 0.0
  %994 = vmatprep.subr.mxu0 0.0
  %995 = vmatpush1.msra.mxu0 0.0
  %996 = vmatprep.mubr.f32.mxu0 0.0
  %997 = vmatmul.mubr.f32.gmra.mrb[0].mxu0 %v930
  %v998 = vpop.f32.mrb[0].mxu0
  %v999 = vadd.f32 %v597, %v998
  %v1000 = vpop.f32.mrb[0].mxu0
  %1001 = vdwg.mxu0
  %v1003 = vrot.slane %v999, 2
  %v1005 = vadd.f32 %v586, %v1003
  %v1006 = vxor.u32 %v1005, 2147483648
  %v1007 = vmul.f32 %v1006, 1.442695
  %v1008 = vpow.pop %v1007
  %v1009 = vadd.f32 %v1008, 1.0
  %v1010 = vrcp.pop %v1009
  %v1011 = vmul.f32 1.0, %v1010
  %1012 = vrot.lane.b32.xlu0 %v1003, 64
  %v1013 = vpop.permute.xlu0 %1012
  %v1015 = vmul.f32 %v1011, %v1013
  %1017 = vrot.lane.b32.xlu0 %v1015, 64
  %v1018 = vpop.permute.xlu0 %1017
  %v1020 = vadd.f32 %v586, %v1018
  %v1021 = vtanh.pop %v1020
  %v1022 = vsub.f32 1.0, %v1011
  %1024 = vrot.lane.b32.xlu0 %v1021, 96
  %v1025 = vpop.permute.xlu0 %1024
  %v1027 = vmul.f32 %v1022, %v1025
  %v1028 = vrot.slane %v919, 6
  %v1030 = vmul.f32 %v1011, %v1028
  %v1031 = vadd.f32 %v1027, %v1030
  %1033 = vrot.lane.b32.xlu0 %v1031, 96
  %v1034 = vpop.permute.xlu0 %1033
  %vm1036 = vcmask 261126
  %1037 = vst.msk [vmem:[#allocation2] sm:$0xc0] %vm1036, %v1034
  %1038 = vst.msk [vmem:[#allocation3 - $0x4] sm:$0xc0] %vm1036, %v1034
  %v1039 = vrot.slane %v1031, 6
  %1040 = vrot.lane.b32.xlu0 %v1039, 96
  %v1041 = vpop.permute.xlu0 %1040
  %v1042 = vsel %vm599, %v1041, 0
  %1044 = vmatprep.subr.mxu0 0.0
  %1045 = vmatpush1.msra.mxu0 %v588
  %1046 = vmatprep.subr.mxu0 0.0
  %1047 = vmatpush1.msra.mxu0 %v589
  %1048 = vmatprep.subr.mxu0 0.0
  %1049 = vmatpush1.msra.mxu0 %v590
  %1050 = vmatprep.subr.mxu0 0.0
  %1051 = vmatpush1.msra.mxu0 %v591
  %1052 = vmatprep.subr.mxu0 0.0
  %1053 = vmatpush1.msra.mxu0 0.0
  %1054 = vmatprep.subr.mxu0 0.0
  %1055 = vmatpush1.msra.mxu0 0.0
  %1056 = vmatprep.subr.mxu0 0.0
  %1057 = vmatpush1.msra.mxu0 0.0
  %1058 = vmatprep.subr.mxu0 0.0
  %1059 = vmatpush1.msra.mxu0 0.0
  %1060 = vmatprep.subr.mxu0 0.0
  %1061 = vmatpush1.msra.mxu0 0.0
  %1062 = vmatprep.subr.mxu0 0.0
  %1063 = vmatpush1.msra.mxu0 0.0
  %1064 = vmatprep.subr.mxu0 0.0
  %1065 = vmatpush1.msra.mxu0 0.0
  %1066 = vmatprep.subr.mxu0 0.0
  %1067 = vmatpush1.msra.mxu0 0.0
  %1068 = vmatprep.subr.mxu0 0.0
  %1069 = vmatpush1.msra.mxu0 0.0
  %1070 = vmatprep.subr.mxu0 0.0
  %1071 = vmatpush1.msra.mxu0 0.0
  %1072 = vmatprep.subr.mxu0 0.0
  %1073 = vmatpush1.msra.mxu0 0.0
  %1074 = vmatprep.subr.mxu0 0.0
  %1075 = vmatpush1.msra.mxu0 0.0
  %1076 = vmatprep.subr.mxu0 0.0
  %1077 = vmatpush1.msra.mxu0 0.0
  %1078 = vmatprep.subr.mxu0 0.0
  %1079 = vmatpush1.msra.mxu0 0.0
  %1080 = vmatprep.subr.mxu0 0.0
  %1081 = vmatpush1.msra.mxu0 0.0
  %1082 = vmatprep.subr.mxu0 0.0
  %1083 = vmatpush1.msra.mxu0 0.0
  %1084 = vmatprep.subr.mxu0 0.0
  %1085 = vmatpush1.msra.mxu0 0.0
  %1086 = vmatprep.subr.mxu0 0.0
  %1087 = vmatpush1.msra.mxu0 0.0
  %1088 = vmatprep.subr.mxu0 0.0
  %1089 = vmatpush1.msra.mxu0 0.0
  %1090 = vmatprep.subr.mxu0 0.0
  %1091 = vmatpush1.msra.mxu0 0.0
  %1092 = vmatprep.subr.mxu0 0.0
  %1093 = vmatpush1.msra.mxu0 0.0
  %1094 = vmatprep.subr.mxu0 0.0
  %1095 = vmatpush1.msra.mxu0 0.0
  %1096 = vmatprep.subr.mxu0 0.0
  %1097 = vmatpush1.msra.mxu0 0.0
  %1098 = vmatprep.subr.mxu0 0.0
  %1099 = vmatpush1.msra.mxu0 0.0
  %1100 = vmatprep.subr.mxu0 0.0
  %1101 = vmatpush1.msra.mxu0 0.0
  %1102 = vmatprep.subr.mxu0 0.0
  %1103 = vmatpush1.msra.mxu0 0.0
  %1104 = vmatprep.subr.mxu0 0.0
  %1105 = vmatpush1.msra.mxu0 0.0
  %1106 = vmatprep.subr.mxu0 0.0
  %1107 = vmatpush1.msra.mxu0 0.0
  %1108 = vmatprep.mubr.f32.mxu0 0.0
  %1109 = vmatmul.mubr.f32.gmra.mrb[0].mxu0 %v1042
  %v1110 = vpop.f32.mrb[0].mxu0
  %v1111 = vadd.f32 %v597, %v1110
  %v1112 = vpop.f32.mrb[0].mxu0
  %1113 = vdwg.mxu0
  %v1114 = vadd.f32 %v587, %v1111
  %v1115 = vxor.u32 %v1114, 2147483648
  %v1116 = vmul.f32 %v1115, 1.442695
  %v1117 = vpow.pop %v1116
  %v1118 = vadd.f32 %v1117, 1.0
  %v1119 = vrcp.pop %v1118
  %v1120 = vmul.f32 1.0, %v1119
  %1122 = vrot.lane.b32.xlu0 %v1111, 64
  %v1123 = vpop.permute.xlu0 %1122
  %v1125 = vmul.f32 %v1120, %v1123
  %1127 = vrot.lane.b32.xlu0 %v1125, 64
  %v1128 = vpop.permute.xlu0 %1127
  %v1130 = vadd.f32 %v587, %v1128
  %v1131 = vtanh.pop %v1130
  %v1132 = vsub.f32 1.0, %v1120
  %1134 = vrot.lane.b32.xlu0 %v1131, 96
  %v1135 = vpop.permute.xlu0 %1134
  %v1137 = vmul.f32 %v1132, %v1135
  %v1139 = vmul.f32 %v1120, %v1039
  %v1140 = vadd.f32 %v1137, %v1139
  %1142 = vrot.lane.b32.xlu0 %v1140, 96
  %v1143 = vpop.permute.xlu0 %1142
  %1145 = vst.msk [vmem:[#allocation2 + $0x8] sm:$0x3] %vm703, %v1143
  %1146 = vst.msk [vmem:[#allocation3] sm:$0x3] %vm703, %v1143
  %v1147 = vld [vmem:[#allocation2] sm:$0xff]
  %v1148 = vld [vmem:[#allocation2 + $0x8] sm:$0x3]
  %v1149 = vld [vmem:[%s13] sm:$0xff]
  %v1150 = vld [vmem:[%s13 + $0x8] sm:$0xff]
  %v1151 = vld [vmem:[%s13 + $0x10] sm:$0xff]
  %v1152 = vld [vmem:[%s13 + $0x18] sm:$0xff]
  %v1153 = vld [vmem:[#allocation3] sm:$0xff]
  %v1154 = vld [vmem:[#allocation3 + $0x8] sm:$0x3]
  %v1155 = vld [vmem:[%s14] sm:$0xff]
  %v1156 = vld [vmem:[%s14 + $0x8] sm:$0xff]
  %v1157 = vld [vmem:[%s14 + $0x10] sm:$0xff]
  %v1158 = vld [vmem:[%s14 + $0x18] sm:$0xff]
  %v1160 = vsel %vm599, %v1153, 0
  %v1163 = vsel %vm599, %v1154, 0
  %1165 = vmatprep.subr.mxu0 0.0
  %1166 = vmatpush1.msra.mxu0 %v1155
  %1167 = vmatprep.subr.mxu0 0.0
  %1168 = vmatpush1.msra.mxu0 %v1156
  %1169 = vmatprep.subr.mxu0 0.0
  %1170 = vmatpush1.msra.mxu0 %v1157
  %1171 = vmatprep.subr.mxu0 0.0
  %1172 = vmatpush1.msra.mxu0 %v1158
  %1173 = vmatprep.subr.mxu0 0.0
  %1174 = vmatpush1.msra.mxu0 0.0
  %1175 = vmatprep.subr.mxu0 0.0
  %1176 = vmatpush1.msra.mxu0 0.0
  %1177 = vmatprep.subr.mxu0 0.0
  %1178 = vmatpush1.msra.mxu0 0.0
  %1179 = vmatprep.subr.mxu0 0.0
  %1180 = vmatpush1.msra.mxu0 0.0
  %1181 = vmatprep.subr.mxu0 0.0
  %1182 = vmatpush1.msra.mxu0 0.0
  %1183 = vmatprep.subr.mxu0 0.0
  %1184 = vmatpush1.msra.mxu0 0.0
  %1185 = vmatprep.subr.mxu0 0.0
  %1186 = vmatpush1.msra.mxu0 0.0
  %1187 = vmatprep.subr.mxu0 0.0
  %1188 = vmatpush1.msra.mxu0 0.0
  %1189 = vmatprep.subr.mxu0 0.0
  %1190 = vmatpush1.msra.mxu0 0.0
  %1191 = vmatprep.subr.mxu0 0.0
  %1192 = vmatpush1.msra.mxu0 0.0
  %1193 = vmatprep.subr.mxu0 0.0
  %1194 = vmatpush1.msra.mxu0 0.0
  %1195 = vmatprep.subr.mxu0 0.0
  %1196 = vmatpush1.msra.mxu0 0.0
  %1197 = vmatprep.subr.mxu0 0.0
  %1198 = vmatpush1.msra.mxu0 0.0
  %1199 = vmatprep.subr.mxu0 0.0
  %1200 = vmatpush1.msra.mxu0 0.0
  %1201 = vmatprep.subr.mxu0 0.0
  %1202 = vmatpush1.msra.mxu0 0.0
  %1203 = vmatprep.subr.mxu0 0.0
  %1204 = vmatpush1.msra.mxu0 0.0
  %1205 = vmatprep.subr.mxu0 0.0
  %1206 = vmatpush1.msra.mxu0 0.0
  %1207 = vmatprep.subr.mxu0 0.0
  %1208 = vmatpush1.msra.mxu0 0.0
  %1209 = vmatprep.subr.mxu0 0.0
  %1210 = vmatpush1.msra.mxu0 0.0
  %1211 = vmatprep.subr.mxu0 0.0
  %1212 = vmatpush1.msra.mxu0 0.0
  %1213 = vmatprep.subr.mxu0 0.0
  %1214 = vmatpush1.msra.mxu0 0.0
  %1215 = vmatprep.subr.mxu0 0.0
  %1216 = vmatpush1.msra.mxu0 0.0
  %1217 = vmatprep.subr.mxu0 0.0
  %1218 = vmatpush1.msra.mxu0 0.0
  %1219 = vmatprep.subr.mxu0 0.0
  %1220 = vmatpush1.msra.mxu0 0.0
  %1221 = vmatprep.subr.mxu0 0.0
  %1222 = vmatpush1.msra.mxu0 0.0
  %1223 = vmatprep.subr.mxu0 0.0
  %1224 = vmatpush1.msra.mxu0 0.0
  %1225 = vmatprep.subr.mxu0 0.0
  %1226 = vmatpush1.msra.mxu0 0.0
  %1227 = vmatprep.subr.mxu0 0.0
  %1228 = vmatpush1.msra.mxu0 0.0
  %1229 = vmatprep.mubr.f32.mxu0 0.0
  %1230 = vmatmul.mubr.f32.gmra.mrb[0].mxu0 %v1160
  %v1231 = vpop.f32.mrb[0].mxu0
  %v1232 = vadd.f32 0.0, %v1231
  %v1233 = vpop.f32.mrb[0].mxu0
  %1234 = vmatprep.mubr.f32.mxu0 0.0
  %1235 = vmatmul.mubr.f32.gmra.mrb[0].mxu0 %v1163
  %v1236 = vpop.f32.mrb[0].mxu0
  %v1237 = vadd.f32 0.0, %v1236
  %v1238 = vpop.f32.mrb[0].mxu0
  %1239 = vdwg.mxu0
  %v1241 = vsel %vm599, %v1147, 0
  %v1244 = vsel %vm599, %v1148, 0
  %1246 = vmatprep.subr.mxu0 0.0
  %1247 = vmatpush1.msra.mxu0 %v1149
  %1248 = vmatprep.subr.mxu0 0.0
  %1249 = vmatpush1.msra.mxu0 %v1150
  %1250 = vmatprep.subr.mxu0 0.0
  %1251 = vmatpush1.msra.mxu0 %v1151
  %1252 = vmatprep.subr.mxu0 0.0
  %1253 = vmatpush1.msra.mxu0 %v1152
  %1254 = vmatprep.subr.mxu0 0.0
  %1255 = vmatpush1.msra.mxu0 0.0
  %1256 = vmatprep.subr.mxu0 0.0
  %1257 = vmatpush1.msra.mxu0 0.0
  %1258 = vmatprep.subr.mxu0 0.0
  %1259 = vmatpush1.msra.mxu0 0.0
  %1260 = vmatprep.subr.mxu0 0.0
  %1261 = vmatpush1.msra.mxu0 0.0
  %1262 = vmatprep.subr.mxu0 0.0
  %1263 = vmatpush1.msra.mxu0 0.0
  %1264 = vmatprep.subr.mxu0 0.0
  %1265 = vmatpush1.msra.mxu0 0.0
  %1266 = vmatprep.subr.mxu0 0.0
  %1267 = vmatpush1.msra.mxu0 0.0
  %1268 = vmatprep.subr.mxu0 0.0
  %1269 = vmatpush1.msra.mxu0 0.0
  %1270 = vmatprep.subr.mxu0 0.0
  %1271 = vmatpush1.msra.mxu0 0.0
  %1272 = vmatprep.subr.mxu0 0.0
  %1273 = vmatpush1.msra.mxu0 0.0
  %1274 = vmatprep.subr.mxu0 0.0
  %1275 = vmatpush1.msra.mxu0 0.0
  %1276 = vmatprep.subr.mxu0 0.0
  %1277 = vmatpush1.msra.mxu0 0.0
  %1278 = vmatprep.subr.mxu0 0.0
  %1279 = vmatpush1.msra.mxu0 0.0
  %1280 = vmatprep.subr.mxu0 0.0
  %1281 = vmatpush1.msra.mxu0 0.0
  %1282 = vmatprep.subr.mxu0 0.0
  %1283 = vmatpush1.msra.mxu0 0.0
  %1284 = vmatprep.subr.mxu0 0.0
  %1285 = vmatpush1.msra.mxu0 0.0
  %1286 = vmatprep.subr.mxu0 0.0
  %1287 = vmatpush1.msra.mxu0 0.0
  %1288 = vmatprep.subr.mxu0 0.0
  %1289 = vmatpush1.msra.mxu0 0.0
  %1290 = vmatprep.subr.mxu0 0.0
  %1291 = vmatpush1.msra.mxu0 0.0
  %1292 = vmatprep.subr.mxu0 0.0
  %1293 = vmatpush1.msra.mxu0 0.0
  %1294 = vmatprep.subr.mxu0 0.0
  %1295 = vmatpush1.msra.mxu0 0.0
  %1296 = vmatprep.subr.mxu0 0.0
  %1297 = vmatpush1.msra.mxu0 0.0
  %1298 = vmatprep.subr.mxu0 0.0
  %1299 = vmatpush1.msra.mxu0 0.0
  %1300 = vmatprep.subr.mxu0 0.0
  %1301 = vmatpush1.msra.mxu0 0.0
  %1302 = vmatprep.subr.mxu0 0.0
  %1303 = vmatpush1.msra.mxu0 0.0
  %1304 = vmatprep.subr.mxu0 0.0
  %1305 = vmatpush1.msra.mxu0 0.0
  %1306 = vmatprep.subr.mxu0 0.0
  %1307 = vmatpush1.msra.mxu0 0.0
  %1308 = vmatprep.subr.mxu0 0.0
  %1309 = vmatpush1.msra.mxu0 0.0
  %1310 = vmatprep.mubr.f32.mxu0 0.0
  %1311 = vmatmul.mubr.f32.gmra.mrb[0].mxu0 %v1241
  %v1312 = vpop.f32.mrb[0].mxu0
  %v1313 = vadd.f32 %v1232, %v1312
  %v1314 = vpop.f32.mrb[0].mxu0
  %1315 = vmatprep.mubr.f32.mxu0 0.0
  %1316 = vmatmul.mubr.f32.gmra.mrb[0].mxu0 %v1244
  %v1317 = vpop.f32.mrb[0].mxu0
  %v1318 = vadd.f32 %v1237, %v1317
  %v1319 = vpop.f32.mrb[0].mxu0
  %1320 = vdwg.mxu0
  %v1321 = vld [vmem:[%s15] sm:$0x1]
  %v1323 = vlaneseq
  %v1324 = vshrl.u32 %v1323, 7
  %v1325 = vsub.s32 0, %v1324
  %v1326 = vrot.slane %v1321, %v1325
  %v1328 = vadd.f32 %v1313, %v1326
  %v1329 = vadd.f32 %v1318, %v1326
  %v1330 = vld [vmem:[%s16] sm:$0xff]
  %v1331 = vld [vmem:[%s16 + $0x8] sm:$0xff]
  %v1332 = vld [vmem:[%s16 + $0x10] sm:$0xff]
  %v1333 = vld [vmem:[%s16 + $0x18] sm:$0xff]
  %v1334 = vld [vmem:[%s17] sm:$0x1]
  %v1335 = vld [vmem:[%s18] sm:$0x1f]
  %v1337 = vlaneseq
  %v1338 = vshrl.u32 %v1337, 7
  %v1339 = vsub.s32 0, %v1338
  %v1340 = vrot.slane %v1334, %v1339
  %1342 = vmatprep.subr.mxu0 0.0
  %1343 = vmatpush1.msra.mxu0 %v1330
  %1344 = vmatprep.subr.mxu0 0.0
  %1345 = vmatpush1.msra.mxu0 %v1331
  %1346 = vmatprep.subr.mxu0 0.0
  %1347 = vmatpush1.msra.mxu0 %v1332
  %1348 = vmatprep.subr.mxu0 0.0
  %1349 = vmatpush1.msra.mxu0 %v1333
  %1350 = vmatprep.subr.mxu0 0.0
  %1351 = vmatpush1.msra.mxu0 0.0
  %1352 = vmatprep.subr.mxu0 0.0
  %1353 = vmatpush1.msra.mxu0 0.0
  %1354 = vmatprep.subr.mxu0 0.0
  %1355 = vmatpush1.msra.mxu0 0.0
  %1356 = vmatprep.subr.mxu0 0.0
  %1357 = vmatpush1.msra.mxu0 0.0
  %1358 = vmatprep.subr.mxu0 0.0
  %1359 = vmatpush1.msra.mxu0 0.0
  %1360 = vmatprep.subr.mxu0 0.0
  %1361 = vmatpush1.msra.mxu0 0.0
  %1362 = vmatprep.subr.mxu0 0.0
  %1363 = vmatpush1.msra.mxu0 0.0
  %1364 = vmatprep.subr.mxu0 0.0
  %1365 = vmatpush1.msra.mxu0 0.0
  %1366 = vmatprep.subr.mxu0 0.0
  %1367 = vmatpush1.msra.mxu0 0.0
  %1368 = vmatprep.subr.mxu0 0.0
  %1369 = vmatpush1.msra.mxu0 0.0
  %1370 = vmatprep.subr.mxu0 0.0
  %1371 = vmatpush1.msra.mxu0 0.0
  %1372 = vmatprep.subr.mxu0 0.0
  %1373 = vmatpush1.msra.mxu0 0.0
  %1374 = vmatprep.subr.mxu0 0.0
  %1375 = vmatpush1.msra.mxu0 0.0
  %1376 = vmatprep.subr.mxu0 0.0
  %1377 = vmatpush1.msra.mxu0 0.0
  %1378 = vmatprep.subr.mxu0 0.0
  %1379 = vmatpush1.msra.mxu0 0.0
  %1380 = vmatprep.subr.mxu0 0.0
  %1381 = vmatpush1.msra.mxu0 0.0
  %1382 = vmatprep.subr.mxu0 0.0
  %1383 = vmatpush1.msra.mxu0 0.0
  %1384 = vmatprep.subr.mxu0 0.0
  %1385 = vmatpush1.msra.mxu0 0.0
  %1386 = vmatprep.subr.mxu0 0.0
  %1387 = vmatpush1.msra.mxu0 0.0
  %1388 = vmatprep.subr.mxu0 0.0
  %1389 = vmatpush1.msra.mxu0 0.0
  %1390 = vmatprep.subr.mxu0 0.0
  %1391 = vmatpush1.msra.mxu0 0.0
  %1392 = vmatprep.subr.mxu0 0.0
  %1393 = vmatpush1.msra.mxu0 0.0
  %1394 = vmatprep.subr.mxu0 0.0
  %1395 = vmatpush1.msra.mxu0 0.0
  %1396 = vmatprep.subr.mxu0 0.0
  %1397 = vmatpush1.msra.mxu0 0.0
  %1398 = vmatprep.subr.mxu0 0.0
  %1399 = vmatpush1.msra.mxu0 0.0
  %1400 = vmatprep.subr.mxu0 0.0
  %1401 = vmatpush1.msra.mxu0 0.0
  %1402 = vmatprep.subr.mxu0 0.0
  %1403 = vmatpush1.msra.mxu0 0.0
  %1404 = vmatprep.subr.mxu0 0.0
  %1405 = vmatpush1.msra.mxu0 0.0
  %1406 = vmatprep.mubr.f32.mxu0 0.0
  %1407 = vmatmul.mubr.f32.gmra.mrb[0].mxu0 %v601
  %v1408 = vpop.f32.mrb[0].mxu0
  %v1409 = vadd.f32 %v1340, %v1408
  %v1410 = vpop.f32.mrb[0].mxu0
  %1411 = vdwg.mxu0
  %v1412 = vadd.f32 %v1328, %v1409
  %v1413 = vxor.u32 %v1412, 2147483648
  %v1414 = vmul.f32 %v1413, 1.442695
  %v1415 = vpow.pop %v1414
  %v1416 = vadd.f32 %v1415, 1.0
  %v1417 = vrcp.pop %v1416
  %v1418 = vmul.f32 1.0, %v1417
  %1420 = vrot.lane.b32.xlu0 %v1409, 64
  %v1421 = vpop.permute.xlu0 %1420
  %v1423 = vmul.f32 %v1418, %v1421
  %1425 = vrot.lane.b32.xlu0 %v1423, 64
  %v1426 = vpop.permute.xlu0 %1425
  %v1428 = vadd.f32 %v1328, %v1426
  %v1429 = vtanh.pop %v1428
  %v1430 = vsub.f32 1.0, %v1418
  %1432 = vrot.lane.b32.xlu0 %v1429, 96
  %v1433 = vpop.permute.xlu0 %1432
  %v1435 = vmul.f32 %v1430, %v1433
  %v1436 = vmul.f32 %v1418, 0.0
  %v1437 = vadd.f32 %v1435, %v1436
  %v1438 = vlaneseq
  %v1439 = vshrl.u32 %v1438, 7
  %v1440 = vsub.s32 0, %v1439
  %v1441 = vrot.slane %v1335, %v1440
  %1443 = vrot.lane.b32.xlu0 %v1441, 32
  %v1444 = vpop.permute.xlu0 %1443
  %v1446 = vmul.f32 %v1437, %v1444
  %1448 = vrot.lane.b32.xlu0 %v1446, 96
  %v1449 = vpop.permute.xlu0 %1448
  %v1451 = vsel %vm703, %v1449, 0.0
  %1452 = vadd.xlane.f32.xlu0 %v1451
  %v1453 = vpop.xlane.xlu0 %1452
  %v1454 = vadd.f32 %v276, %v1453
  %1456 = vrot.lane.b32.xlu0 %v1437, 96
  %v1457 = vpop.permute.xlu0 %1456
  %v1458 = vsel %vm599, %v1457, 0
  %1460 = vmatprep.subr.mxu0 0.0
  %1461 = vmatpush1.msra.mxu0 %v1330
  %1462 = vmatprep.subr.mxu0 0.0
  %1463 = vmatpush1.msra.mxu0 %v1331
  %1464 = vmatprep.subr.mxu0 0.0
  %1465 = vmatpush1.msra.mxu0 %v1332
  %1466 = vmatprep.subr.mxu0 0.0
  %1467 = vmatpush1.msra.mxu0 %v1333
  %1468 = vmatprep.subr.mxu0 0.0
  %1469 = vmatpush1.msra.mxu0 0.0
  %1470 = vmatprep.subr.mxu0 0.0
  %1471 = vmatpush1.msra.mxu0 0.0
  %1472 = vmatprep.subr.mxu0 0.0
  %1473 = vmatpush1.msra.mxu0 0.0
  %1474 = vmatprep.subr.mxu0 0.0
  %1475 = vmatpush1.msra.mxu0 0.0
  %1476 = vmatprep.subr.mxu0 0.0
  %1477 = vmatpush1.msra.mxu0 0.0
  %1478 = vmatprep.subr.mxu0 0.0
  %1479 = vmatpush1.msra.mxu0 0.0
  %1480 = vmatprep.subr.mxu0 0.0
  %1481 = vmatpush1.msra.mxu0 0.0
  %1482 = vmatprep.subr.mxu0 0.0
  %1483 = vmatpush1.msra.mxu0 0.0
  %1484 = vmatprep.subr.mxu0 0.0
  %1485 = vmatpush1.msra.mxu0 0.0
  %1486 = vmatprep.subr.mxu0 0.0
  %1487 = vmatpush1.msra.mxu0 0.0
  %1488 = vmatprep.subr.mxu0 0.0
  %1489 = vmatpush1.msra.mxu0 0.0
  %1490 = vmatprep.subr.mxu0 0.0
  %1491 = vmatpush1.msra.mxu0 0.0
  %1492 = vmatprep.subr.mxu0 0.0
  %1493 = vmatpush1.msra.mxu0 0.0
  %1494 = vmatprep.subr.mxu0 0.0
  %1495 = vmatpush1.msra.mxu0 0.0
  %1496 = vmatprep.subr.mxu0 0.0
  %1497 = vmatpush1.msra.mxu0 0.0
  %1498 = vmatprep.subr.mxu0 0.0
  %1499 = vmatpush1.msra.mxu0 0.0
  %1500 = vmatprep.subr.mxu0 0.0
  %1501 = vmatpush1.msra.mxu0 0.0
  %1502 = vmatprep.subr.mxu0 0.0
  %1503 = vmatpush1.msra.mxu0 0.0
  %1504 = vmatprep.subr.mxu0 0.0
  %1505 = vmatpush1.msra.mxu0 0.0
  %1506 = vmatprep.subr.mxu0 0.0
  %1507 = vmatpush1.msra.mxu0 0.0
  %1508 = vmatprep.subr.mxu0 0.0
  %1509 = vmatpush1.msra.mxu0 0.0
  %1510 = vmatprep.subr.mxu0 0.0
  %1511 = vmatpush1.msra.mxu0 0.0
  %1512 = vmatprep.subr.mxu0 0.0
  %1513 = vmatpush1.msra.mxu0 0.0
  %1514 = vmatprep.subr.mxu0 0.0
  %1515 = vmatpush1.msra.mxu0 0.0
  %1516 = vmatprep.subr.mxu0 0.0
  %1517 = vmatpush1.msra.mxu0 0.0
  %1518 = vmatprep.subr.mxu0 0.0
  %1519 = vmatpush1.msra.mxu0 0.0
  %1520 = vmatprep.subr.mxu0 0.0
  %1521 = vmatpush1.msra.mxu0 0.0
  %1522 = vmatprep.subr.mxu0 0.0
  %1523 = vmatpush1.msra.mxu0 0.0
  %1524 = vmatprep.mubr.f32.mxu0 0.0
  %1525 = vmatmul.mubr.f32.gmra.mrb[0].mxu0 %v1458
  %v1526 = vpop.f32.mrb[0].mxu0
  %v1527 = vadd.f32 %v1340, %v1526
  %v1528 = vpop.f32.mrb[0].mxu0
  %1529 = vdwg.mxu0
  %v1531 = vrot.slane %v1527, 6
  %v1533 = vadd.f32 %v1328, %v1531
  %v1534 = vxor.u32 %v1533, 2147483648
  %v1535 = vmul.f32 %v1534, 1.442695
  %v1536 = vpow.pop %v1535
  %v1537 = vadd.f32 %v1536, 1.0
  %v1538 = vrcp.pop %v1537
  %v1539 = vmul.f32 1.0, %v1538
  %1540 = vrot.lane.b32.xlu0 %v1531, 64
  %v1541 = vpop.permute.xlu0 %1540
  %v1543 = vmul.f32 %v1539, %v1541
  %1545 = vrot.lane.b32.xlu0 %v1543, 64
  %v1546 = vpop.permute.xlu0 %1545
  %v1548 = vadd.f32 %v1328, %v1546
  %v1549 = vtanh.pop %v1548
  %v1550 = vsub.f32 1.0, %v1539
  %1552 = vrot.lane.b32.xlu0 %v1549, 96
  %v1553 = vpop.permute.xlu0 %1552
  %v1555 = vmul.f32 %v1550, %v1553
  %v1556 = vrot.slane %v1437, 6
  %v1558 = vmul.f32 %v1539, %v1556
  %v1559 = vadd.f32 %v1555, %v1558
  %v1560 = vlaneseq
  %v1561 = vshrl.u32 %v1560, 7
  %v1562 = vsub.s32 1, %v1561
  %v1563 = vrot.slane %v1335, %v1562
  %1565 = vrot.lane.b32.xlu0 %v1563, 32
  %v1566 = vpop.permute.xlu0 %1565
  %v1568 = vmul.f32 %v1559, %v1566
  %1570 = vrot.lane.b32.xlu0 %v1568, 96
  %v1571 = vpop.permute.xlu0 %1570
  %v1573 = vsel %vm812, %v1571, 0.0
  %1574 = vadd.xlane.f32.xlu0 %v1573
  %v1575 = vpop.xlane.xlu0 %1574
  %v1577 = vrot.slane %v1575, 2
  %v1579 = vadd.f32 %v1454, %v1577
  %v1581 = vrot.slane %v1559, 2
  %1582 = vrot.lane.b32.xlu0 %v1581, 96
  %v1583 = vpop.permute.xlu0 %1582
  %v1584 = vsel %vm599, %v1583, 0
  %1586 = vmatprep.subr.mxu0 0.0
  %1587 = vmatpush1.msra.mxu0 %v1330
  %1588 = vmatprep.subr.mxu0 0.0
  %1589 = vmatpush1.msra.mxu0 %v1331
  %1590 = vmatprep.subr.mxu0 0.0
  %1591 = vmatpush1.msra.mxu0 %v1332
  %1592 = vmatprep.subr.mxu0 0.0
  %1593 = vmatpush1.msra.mxu0 %v1333
  %1594 = vmatprep.subr.mxu0 0.0
  %1595 = vmatpush1.msra.mxu0 0.0
  %1596 = vmatprep.subr.mxu0 0.0
  %1597 = vmatpush1.msra.mxu0 0.0
  %1598 = vmatprep.subr.mxu0 0.0
  %1599 = vmatpush1.msra.mxu0 0.0
  %1600 = vmatprep.subr.mxu0 0.0
  %1601 = vmatpush1.msra.mxu0 0.0
  %1602 = vmatprep.subr.mxu0 0.0
  %1603 = vmatpush1.msra.mxu0 0.0
  %1604 = vmatprep.subr.mxu0 0.0
  %1605 = vmatpush1.msra.mxu0 0.0
  %1606 = vmatprep.subr.mxu0 0.0
  %1607 = vmatpush1.msra.mxu0 0.0
  %1608 = vmatprep.subr.mxu0 0.0
  %1609 = vmatpush1.msra.mxu0 0.0
  %1610 = vmatprep.subr.mxu0 0.0
  %1611 = vmatpush1.msra.mxu0 0.0
  %1612 = vmatprep.subr.mxu0 0.0
  %1613 = vmatpush1.msra.mxu0 0.0
  %1614 = vmatprep.subr.mxu0 0.0
  %1615 = vmatpush1.msra.mxu0 0.0
  %1616 = vmatprep.subr.mxu0 0.0
  %1617 = vmatpush1.msra.mxu0 0.0
  %1618 = vmatprep.subr.mxu0 0.0
  %1619 = vmatpush1.msra.mxu0 0.0
  %1620 = vmatprep.subr.mxu0 0.0
  %1621 = vmatpush1.msra.mxu0 0.0
  %1622 = vmatprep.subr.mxu0 0.0
  %1623 = vmatpush1.msra.mxu0 0.0
  %1624 = vmatprep.subr.mxu0 0.0
  %1625 = vmatpush1.msra.mxu0 0.0
  %1626 = vmatprep.subr.mxu0 0.0
  %1627 = vmatpush1.msra.mxu0 0.0
  %1628 = vmatprep.subr.mxu0 0.0
  %1629 = vmatpush1.msra.mxu0 0.0
  %1630 = vmatprep.subr.mxu0 0.0
  %1631 = vmatpush1.msra.mxu0 0.0
  %1632 = vmatprep.subr.mxu0 0.0
  %1633 = vmatpush1.msra.mxu0 0.0
  %1634 = vmatprep.subr.mxu0 0.0
  %1635 = vmatpush1.msra.mxu0 0.0
  %1636 = vmatprep.subr.mxu0 0.0
  %1637 = vmatpush1.msra.mxu0 0.0
  %1638 = vmatprep.subr.mxu0 0.0
  %1639 = vmatpush1.msra.mxu0 0.0
  %1640 = vmatprep.subr.mxu0 0.0
  %1641 = vmatpush1.msra.mxu0 0.0
  %1642 = vmatprep.subr.mxu0 0.0
  %1643 = vmatpush1.msra.mxu0 0.0
  %1644 = vmatprep.subr.mxu0 0.0
  %1645 = vmatpush1.msra.mxu0 0.0
  %1646 = vmatprep.subr.mxu0 0.0
  %1647 = vmatpush1.msra.mxu0 0.0
  %1648 = vmatprep.subr.mxu0 0.0
  %1649 = vmatpush1.msra.mxu0 0.0
  %1650 = vmatprep.mubr.f32.mxu0 0.0
  %1651 = vmatmul.mubr.f32.gmra.mrb[0].mxu0 %v1584
  %v1652 = vpop.f32.mrb[0].mxu0
  %v1653 = vadd.f32 %v1340, %v1652
  %v1654 = vpop.f32.mrb[0].mxu0
  %1655 = vdwg.mxu0
  %v1657 = vrot.slane %v1653, 4
  %v1659 = vadd.f32 %v1328, %v1657
  %v1660 = vxor.u32 %v1659, 2147483648
  %v1661 = vmul.f32 %v1660, 1.442695
  %v1662 = vpow.pop %v1661
  %v1663 = vadd.f32 %v1662, 1.0
  %v1664 = vrcp.pop %v1663
  %v1665 = vmul.f32 1.0, %v1664
  %1666 = vrot.lane.b32.xlu0 %v1657, 64
  %v1667 = vpop.permute.xlu0 %1666
  %v1669 = vmul.f32 %v1665, %v1667
  %1671 = vrot.lane.b32.xlu0 %v1669, 64
  %v1672 = vpop.permute.xlu0 %1671
  %v1674 = vadd.f32 %v1328, %v1672
  %v1675 = vtanh.pop %v1674
  %v1676 = vsub.f32 1.0, %v1665
  %1678 = vrot.lane.b32.xlu0 %v1675, 96
  %v1679 = vpop.permute.xlu0 %1678
  %v1681 = vmul.f32 %v1676, %v1679
  %v1682 = vrot.slane %v1559, 6
  %v1684 = vmul.f32 %v1665, %v1682
  %v1685 = vadd.f32 %v1681, %v1684
  %v1686 = vlaneseq
  %v1687 = vshrl.u32 %v1686, 7
  %v1688 = vsub.s32 2, %v1687
  %v1689 = vrot.slane %v1335, %v1688
  %1691 = vrot.lane.b32.xlu0 %v1689, 32
  %v1692 = vpop.permute.xlu0 %1691
  %v1694 = vmul.f32 %v1685, %v1692
  %1696 = vrot.lane.b32.xlu0 %v1694, 96
  %v1697 = vpop.permute.xlu0 %1696
  %v1699 = vsel %vm924, %v1697, 0.0
  %1700 = vadd.xlane.f32.xlu0 %v1699
  %v1701 = vpop.xlane.xlu0 %1700
  %v1703 = vrot.slane %v1701, 4
  %v1705 = vadd.f32 %v1579, %v1703
  %v1707 = vrot.slane %v1685, 4
  %1708 = vrot.lane.b32.xlu0 %v1707, 96
  %v1709 = vpop.permute.xlu0 %1708
  %v1710 = vsel %vm599, %v1709, 0
  %1712 = vmatprep.subr.mxu0 0.0
  %1713 = vmatpush1.msra.mxu0 %v1330
  %1714 = vmatprep.subr.mxu0 0.0
  %1715 = vmatpush1.msra.mxu0 %v1331
  %1716 = vmatprep.subr.mxu0 0.0
  %1717 = vmatpush1.msra.mxu0 %v1332
  %1718 = vmatprep.subr.mxu0 0.0
  %1719 = vmatpush1.msra.mxu0 %v1333
  %1720 = vmatprep.subr.mxu0 0.0
  %1721 = vmatpush1.msra.mxu0 0.0
  %1722 = vmatprep.subr.mxu0 0.0
  %1723 = vmatpush1.msra.mxu0 0.0
  %1724 = vmatprep.subr.mxu0 0.0
  %1725 = vmatpush1.msra.mxu0 0.0
  %1726 = vmatprep.subr.mxu0 0.0
  %1727 = vmatpush1.msra.mxu0 0.0
  %1728 = vmatprep.subr.mxu0 0.0
  %1729 = vmatpush1.msra.mxu0 0.0
  %1730 = vmatprep.subr.mxu0 0.0
  %1731 = vmatpush1.msra.mxu0 0.0
  %1732 = vmatprep.subr.mxu0 0.0
  %1733 = vmatpush1.msra.mxu0 0.0
  %1734 = vmatprep.subr.mxu0 0.0
  %1735 = vmatpush1.msra.mxu0 0.0
  %1736 = vmatprep.subr.mxu0 0.0
  %1737 = vmatpush1.msra.mxu0 0.0
  %1738 = vmatprep.subr.mxu0 0.0
  %1739 = vmatpush1.msra.mxu0 0.0
  %1740 = vmatprep.subr.mxu0 0.0
  %1741 = vmatpush1.msra.mxu0 0.0
  %1742 = vmatprep.subr.mxu0 0.0
  %1743 = vmatpush1.msra.mxu0 0.0
  %1744 = vmatprep.subr.mxu0 0.0
  %1745 = vmatpush1.msra.mxu0 0.0
  %1746 = vmatprep.subr.mxu0 0.0
  %1747 = vmatpush1.msra.mxu0 0.0
  %1748 = vmatprep.subr.mxu0 0.0
  %1749 = vmatpush1.msra.mxu0 0.0
  %1750 = vmatprep.subr.mxu0 0.0
  %1751 = vmatpush1.msra.mxu0 0.0
  %1752 = vmatprep.subr.mxu0 0.0
  %1753 = vmatpush1.msra.mxu0 0.0
  %1754 = vmatprep.subr.mxu0 0.0
  %1755 = vmatpush1.msra.mxu0 0.0
  %1756 = vmatprep.subr.mxu0 0.0
  %1757 = vmatpush1.msra.mxu0 0.0
  %1758 = vmatprep.subr.mxu0 0.0
  %1759 = vmatpush1.msra.mxu0 0.0
  %1760 = vmatprep.subr.mxu0 0.0
  %1761 = vmatpush1.msra.mxu0 0.0
  %1762 = vmatprep.subr.mxu0 0.0
  %1763 = vmatpush1.msra.mxu0 0.0
  %1764 = vmatprep.subr.mxu0 0.0
  %1765 = vmatpush1.msra.mxu0 0.0
  %1766 = vmatprep.subr.mxu0 0.0
  %1767 = vmatpush1.msra.mxu0 0.0
  %1768 = vmatprep.subr.mxu0 0.0
  %1769 = vmatpush1.msra.mxu0 0.0
  %1770 = vmatprep.subr.mxu0 0.0
  %1771 = vmatpush1.msra.mxu0 0.0
  %1772 = vmatprep.subr.mxu0 0.0
  %1773 = vmatpush1.msra.mxu0 0.0
  %1774 = vmatprep.subr.mxu0 0.0
  %1775 = vmatpush1.msra.mxu0 0.0
  %1776 = vmatprep.mubr.f32.mxu0 0.0
  %1777 = vmatmul.mubr.f32.gmra.mrb[0].mxu0 %v1710
  %v1778 = vpop.f32.mrb[0].mxu0
  %v1779 = vadd.f32 %v1340, %v1778
  %v1780 = vpop.f32.mrb[0].mxu0
  %1781 = vdwg.mxu0
  %v1783 = vrot.slane %v1779, 2
  %v1785 = vadd.f32 %v1328, %v1783
  %v1786 = vxor.u32 %v1785, 2147483648
  %v1787 = vmul.f32 %v1786, 1.442695
  %v1788 = vpow.pop %v1787
  %v1789 = vadd.f32 %v1788, 1.0
  %v1790 = vrcp.pop %v1789
  %v1791 = vmul.f32 1.0, %v1790
  %1792 = vrot.lane.b32.xlu0 %v1783, 64
  %v1793 = vpop.permute.xlu0 %1792
  %v1795 = vmul.f32 %v1791, %v1793
  %1797 = vrot.lane.b32.xlu0 %v1795, 64
  %v1798 = vpop.permute.xlu0 %1797
  %v1800 = vadd.f32 %v1328, %v1798
  %v1801 = vtanh.pop %v1800
  %v1802 = vsub.f32 1.0, %v1791
  %1804 = vrot.lane.b32.xlu0 %v1801, 96
  %v1805 = vpop.permute.xlu0 %1804
  %v1807 = vmul.f32 %v1802, %v1805
  %v1808 = vrot.slane %v1685, 6
  %v1810 = vmul.f32 %v1791, %v1808
  %v1811 = vadd.f32 %v1807, %v1810
  %v1812 = vlaneseq
  %v1813 = vshrl.u32 %v1812, 7
  %v1814 = vsub.s32 3, %v1813
  %v1815 = vrot.slane %v1335, %v1814
  %1817 = vrot.lane.b32.xlu0 %v1815, 32
  %v1818 = vpop.permute.xlu0 %1817
  %v1820 = vmul.f32 %v1811, %v1818
  %1822 = vrot.lane.b32.xlu0 %v1820, 96
  %v1823 = vpop.permute.xlu0 %1822
  %v1825 = vsel %vm1036, %v1823, 0.0
  %1826 = vadd.xlane.f32.xlu0 %v1825
  %v1827 = vpop.xlane.xlu0 %1826
  %v1829 = vrot.slane %v1827, 6
  %v1831 = vadd.f32 %v1705, %v1829
  %v1833 = vrot.slane %v1811, 6
  %1834 = vrot.lane.b32.xlu0 %v1833, 96
  %v1835 = vpop.permute.xlu0 %1834
  %v1836 = vsel %vm599, %v1835, 0
  %1838 = vmatprep.subr.mxu0 0.0
  %1839 = vmatpush1.msra.mxu0 %v1330
  %1840 = vmatprep.subr.mxu0 0.0
  %1841 = vmatpush1.msra.mxu0 %v1331
  %1842 = vmatprep.subr.mxu0 0.0
  %1843 = vmatpush1.msra.mxu0 %v1332
  %1844 = vmatprep.subr.mxu0 0.0
  %1845 = vmatpush1.msra.mxu0 %v1333
  %1846 = vmatprep.subr.mxu0 0.0
  %1847 = vmatpush1.msra.mxu0 0.0
  %1848 = vmatprep.subr.mxu0 0.0
  %1849 = vmatpush1.msra.mxu0 0.0
  %1850 = vmatprep.subr.mxu0 0.0
  %1851 = vmatpush1.msra.mxu0 0.0
  %1852 = vmatprep.subr.mxu0 0.0
  %1853 = vmatpush1.msra.mxu0 0.0
  %1854 = vmatprep.subr.mxu0 0.0
  %1855 = vmatpush1.msra.mxu0 0.0
  %1856 = vmatprep.subr.mxu0 0.0
  %1857 = vmatpush1.msra.mxu0 0.0
  %1858 = vmatprep.subr.mxu0 0.0
  %1859 = vmatpush1.msra.mxu0 0.0
  %1860 = vmatprep.subr.mxu0 0.0
  %1861 = vmatpush1.msra.mxu0 0.0
  %1862 = vmatprep.subr.mxu0 0.0
  %1863 = vmatpush1.msra.mxu0 0.0
  %1864 = vmatprep.subr.mxu0 0.0
  %1865 = vmatpush1.msra.mxu0 0.0
  %1866 = vmatprep.subr.mxu0 0.0
  %1867 = vmatpush1.msra.mxu0 0.0
  %1868 = vmatprep.subr.mxu0 0.0
  %1869 = vmatpush1.msra.mxu0 0.0
  %1870 = vmatprep.subr.mxu0 0.0
  %1871 = vmatpush1.msra.mxu0 0.0
  %1872 = vmatprep.subr.mxu0 0.0
  %1873 = vmatpush1.msra.mxu0 0.0
  %1874 = vmatprep.subr.mxu0 0.0
  %1875 = vmatpush1.msra.mxu0 0.0
  %1876 = vmatprep.subr.mxu0 0.0
  %1877 = vmatpush1.msra.mxu0 0.0
  %1878 = vmatprep.subr.mxu0 0.0
  %1879 = vmatpush1.msra.mxu0 0.0
  %1880 = vmatprep.subr.mxu0 0.0
  %1881 = vmatpush1.msra.mxu0 0.0
  %1882 = vmatprep.subr.mxu0 0.0
  %1883 = vmatpush1.msra.mxu0 0.0
  %1884 = vmatprep.subr.mxu0 0.0
  %1885 = vmatpush1.msra.mxu0 0.0
  %1886 = vmatprep.subr.mxu0 0.0
  %1887 = vmatpush1.msra.mxu0 0.0
  %1888 = vmatprep.subr.mxu0 0.0
  %1889 = vmatpush1.msra.mxu0 0.0
  %1890 = vmatprep.subr.mxu0 0.0
  %1891 = vmatpush1.msra.mxu0 0.0
  %1892 = vmatprep.subr.mxu0 0.0
  %1893 = vmatpush1.msra.mxu0 0.0
  %1894 = vmatprep.subr.mxu0 0.0
  %1895 = vmatpush1.msra.mxu0 0.0
  %1896 = vmatprep.subr.mxu0 0.0
  %1897 = vmatpush1.msra.mxu0 0.0
  %1898 = vmatprep.subr.mxu0 0.0
  %1899 = vmatpush1.msra.mxu0 0.0
  %1900 = vmatprep.subr.mxu0 0.0
  %1901 = vmatpush1.msra.mxu0 0.0
  %1902 = vmatprep.mubr.f32.mxu0 0.0
  %1903 = vmatmul.mubr.f32.gmra.mrb[0].mxu0 %v1836
  %v1904 = vpop.f32.mrb[0].mxu0
  %v1905 = vadd.f32 %v1340, %v1904
  %v1906 = vpop.f32.mrb[0].mxu0
  %1907 = vdwg.mxu0
  %v1908 = vadd.f32 %v1329, %v1905
  %v1909 = vxor.u32 %v1908, 2147483648
  %v1910 = vmul.f32 %v1909, 1.442695
  %v1911 = vpow.pop %v1910
  %v1912 = vadd.f32 %v1911, 1.0
  %v1913 = vrcp.pop %v1912
  %v1914 = vmul.f32 1.0, %v1913
  %1916 = vrot.lane.b32.xlu0 %v1905, 64
  %v1917 = vpop.permute.xlu0 %1916
  %v1919 = vmul.f32 %v1914, %v1917
  %1921 = vrot.lane.b32.xlu0 %v1919, 64
  %v1922 = vpop.permute.xlu0 %1921
  %v1924 = vadd.f32 %v1329, %v1922
  %v1925 = vtanh.pop %v1924
  %v1926 = vsub.f32 1.0, %v1914
  %1928 = vrot.lane.b32.xlu0 %v1925, 96
  %v1929 = vpop.permute.xlu0 %1928
  %v1931 = vmul.f32 %v1926, %v1929
  %v1933 = vmul.f32 %v1914, %v1833
  %v1934 = vadd.f32 %v1931, %v1933
  %v1935 = vlaneseq
  %v1936 = vshrl.u32 %v1935, 7
  %v1937 = vsub.s32 4, %v1936
  %v1938 = vrot.slane %v1335, %v1937
  %1940 = vrot.lane.b32.xlu0 %v1938, 32
  %v1941 = vpop.permute.xlu0 %1940
  %v1943 = vmul.f32 %v1934, %v1941
  %1945 = vrot.lane.b32.xlu0 %v1943, 96
  %v1946 = vpop.permute.xlu0 %1945
  %v1948 = vsel %vm703, %v1946, 0.0
  %1949 = vadd.xlane.f32.xlu0 %v1948
  %v1950 = vpop.xlane.xlu0 %1949
  %v1951 = vadd.f32 %v1831, %v1950
  %vm1952 = vcmask 1024
  %1953 = vst.msk [vmem:[%s21] sm:$0x3] %vm1952, %v1951
  // Predicated region
  $region86: #{grub_forward.1} parent=0 // pred_check
    _
  $region87: #{grub_forward.1} parent=0 // pred_check_branch
    %1955 = sbr.rel (0) target = $region89
  $region88: #{grub_forward.1} parent=0 // pred_region
    _
  $region89: #{grub_forward.1} parent=0 // pred_fallthru
    _
  // Predicated region
  $region90: #{grub_forward.1} parent=0 // pred_check
    _
  $region91: #{grub_forward.1} parent=0 // pred_check_branch
    %1957 = sbr.rel (0) target = $region93
  $region92: #{grub_forward.1} parent=0 // pred_region
    _
  $region93: #{grub_forward.1} parent=0 // pred_fallthru
    _

</llo_original>
